<compile_context>
chip_gen: v5e
topology: v5e:2x2
jax: 0.10.0
libtpu: 0.0.40
codegen_flags: <defaults>
</compile_context>

<pallas_src>
import functools

import jax
import jax.numpy as jnp
from jax import lax
from jax.experimental import pallas as pl
from jax.experimental.pallas import tpu as pltpu

KSIZE = 4
EPS = 1e-5
NEG_SLOPE = 0.2
LANE = 128


def _convblock_kernel(w_ref, x_ref, mask_ref, gamma_ref, beta_ref, out_ref, *scratch,
                      stride, ws, tc, nct, n_valid):
    """One (sample n, C_in-tile c) grid step.

    w_ref     : (16, C_out, C_in)     bf16  per-tap weights, resident (constant index_map)
    x_ref     : (1, s*s, tc, L_pad)   bf16  stride-phase planes of sample n / C_in tile c
    mask_ref  : (1, P_pad)            f32   1.0 on valid output columns
    gamma_ref : (C_out, 1)            f32
    beta_ref  : (C_out, 1)            f32
    out_ref   : (1, C_out, P_pad)     x.dtype, lane-dense; resident across the c axis
    scratch   : optionally ((1, C_out, P_pad) f32,) when the output dtype is not f32
    """
    c = pl.program_id(1)
    p_pad = out_ref.shape[-1]
    # f32 outputs accumulate in place in the resident output block (saves VMEM on v7x).
    acc_ref = scratch[0] if scratch else out_ref

    @pl.when(c == 0)
    def _init():
        acc_ref[0] = jnp.zeros(acc_ref.shape[1:], jnp.float32)

    if nct > 1:
        c_base = pl.multiple_of(c * tc, tc)

    # Conv as 16 tap matmuls on the MXU: bf16 operands, f32 accumulation.
    for kh in range(KSIZE):
        for kw in range(KSIZE):
            phase = (kh % stride) * stride + (kw % stride)
            off = (kh // stride) * ws + (kw // stride)            # static lane offset
            x_t = x_ref[0, phase, :, pl.ds(off, p_pad)]           # (tc, P_pad) bf16
            if nct == 1:
                w_t = w_ref[kh * KSIZE + kw]                      # (C_out, C_in) bf16
            else:
                w_t = w_ref[kh * KSIZE + kw, :, pl.ds(c_base, tc)]
            acc_ref[0] += jnp.dot(w_t, x_t, preferred_element_type=jnp.float32)

    @pl.when(c == nct - 1)
    def _finalize():
        y = acc_ref[0].astype(jnp.float32)                        # (C_out, P_pad)
        m = mask_ref[...]                                         # (1, P_pad)
        ym = y * m
        inv_p = 1.0 / n_valid
        mean = jnp.sum(ym, axis=1, keepdims=True) * inv_p         # (C_out, 1)
        var = jnp.sum(ym * y, axis=1, keepdims=True) * inv_p - mean * mean
        scale = gamma_ref[...] * lax.rsqrt(var + EPS)             # rsqrt -> EUP
        shift = beta_ref[...] - mean * scale
        z = y * scale + shift
        out_ref[0] = jnp.maximum(z, NEG_SLOPE * z).astype(out_ref.dtype)


def _round_up(v, m):
    return ((v + m - 1) // m) * m


def _vmem_budget_bytes():
    cap = 64 * 1024 * 1024                       # conservative fallback (v7x physical)
    try:
        info = pltpu.get_tpu_info()
        attr = getattr(info, "vmem_capacity_bytes", None)
        if attr:
            cap = int(attr)
    except Exception:
        pass
    # ~48 MiB on v7x (64 MiB physical), ~96 MiB on v5e/v6e (128 MiB physical).
    return max(32 * 1024 * 1024, min(cap * 3 // 4, 100 * 1024 * 1024))


def conv_block(x, weight, gamma, beta, stride):
    """x: (N, C_in, H, W); weight: (C_out, C_in, 4, 4); gamma/beta: (C_out,).
    Returns (N, C_out, H_out, W_out), matching PyTorch ConvBlock.forward
    (padding=0 so padding_mode='reflect' is a no-op; InstanceNorm uses biased variance)."""
    N, C_in, H, W = x.shape
    C_out = weight.shape[0]
    s = int(stride)
    Ho = (H - KSIZE) // s + 1
    Wo = (W - KSIZE) // s + 1
    assert Ho > 0 and Wo > 0, "input smaller than the 4x4 kernel"

    Hs, Ws = -(-H // s), -(-W // s)              # phase-plane extents (ceil division)
    d_max = (KSIZE - 1) // s                     # max tap offset inside a phase plane
    P_cols = Ho * Ws                             # produced columns (incl. per-row junk)
    P = Ho * Wo                                  # valid output pixels (stats count)
    P_pad = _round_up(P_cols, LANE)              # lane-dense output width
    L_pad = max(_round_up(d_max * Ws + d_max + P_pad, LANE),
                _round_up(Hs * Ws, LANE))        # flat phase-plane length (+ slack)

    # Stride-phase space-to-depth (no data inflation):
    #   x_flat[n, ph*s + pw, ci, i*Ws + j] = x[n, ci, i*s + ph, j*s + pw]
    xb = x.astype(jnp.bfloat16)                  # halves HBM traffic; MXU accumulates f32
    Hp, Wp = Hs * s, Ws * s
    if Hp != H or Wp != W:
        xb = jnp.pad(xb, ((0, 0), (0, 0), (0, Hp - H), (0, Wp - W)))
    xb = xb.reshape(N, C_in, Hs, s, Ws, s)
    xb = xb.transpose(0, 3, 5, 1, 2, 4).reshape(N, s * s, C_in, Hs * Ws)
    x_flat = jnp.pad(xb, ((0, 0), (0, 0), (0, 0), (0, L_pad - Hs * Ws)))

    # Per-tap weight matrices, tap index = kh*4 + kw (resident in VMEM).
    w_taps = weight.transpose(2, 3, 0, 1).reshape(KSIZE * KSIZE, C_out, C_in)
    w_taps = w_taps.astype(jnp.bfloat16)

    gamma2 = gamma.reshape(C_out, 1).astype(jnp.float32)
    beta2 = beta.reshape(C_out, 1).astype(jnp.float32)

    # Column (oh*Ws + j) is a real output pixel iff j < Wo (and the column is < P_cols).
    col = jnp.arange(P_pad, dtype=jnp.int32)
    mask = ((col < P_cols) & ((col % Ws) < Wo)).astype(jnp.float32).reshape(1, P_pad)

    out_dtype = x.dtype
    out_item = jnp.dtype(out_dtype).itemsize
    use_scratch = jnp.dtype(out_dtype) != jnp.dtype(jnp.float32)
    budget = _vmem_budget_bytes()

    def vmem_estimate(tc):
        x_blk = 2 * (s * s) * tc * L_pad * 2               # double-buffered bf16 input
        w_res = 2 * KSIZE * KSIZE * C_out * C_in * 2       # resident weight
        o_blk = 2 * C_out * P_pad * out_item               # output block
        a_blk = (C_out * P_pad * 4) if use_scratch else 0  # f32 accumulator scratch
        return x_blk + w_res + o_blk + a_blk + 2 * P_pad * 4

    # Largest C_in tile (full C_in, or a multiple of 8 dividing C_in) within budget.
    cands = [C_in] + [d for d in range(8 * (C_in // 8), 7, -8)
                      if C_in % d == 0 and d != C_in]
    tc = cands[-1]
    for cand in cands:
        if vmem_estimate(cand) <= budget:
            tc = cand
            break
    # TODO(synk): tile the P (lane) axis with two-pass stats for feature maps whose
    # (C_out, P_pad) accumulator alone exceeds the VMEM budget.
    # TODO(synk): batch several samples into the lane axis (and/or split C_out as an extra
    # parallel grid axis) to fill the 256-wide MXU / both v7x TensorCores when P is small.
    nct = C_in // tc

    kernel = functools.partial(_convblock_kernel, stride=s, ws=Ws, tc=tc, nct=nct,
                               n_valid=float(P))
    scratch_shapes = ([pltpu.VMEM((1, C_out, P_pad), jnp.float32)] if use_scratch else [])

    out = pl.pallas_call(
        kernel,
        out_shape=jax.ShapeDtypeStruct((N, C_out, P_pad), out_dtype),
        grid_spec=pltpu.PrefetchScalarGridSpec(
            num_scalar_prefetch=0,
            grid=(N, nct),                                  # reduction axis (C_in) last
            in_specs=[
                pl.BlockSpec((KSIZE * KSIZE, C_out, C_in), lambda n, c: (0, 0, 0)),
                pl.BlockSpec((1, s * s, tc, L_pad), lambda n, c: (n, 0, c, 0)),
                pl.BlockSpec((1, P_pad), lambda n, c: (0, 0)),
                pl.BlockSpec((C_out, 1), lambda n, c: (0, 0)),
                pl.BlockSpec((C_out, 1), lambda n, c: (0, 0)),
            ],
            out_specs=pl.BlockSpec((1, C_out, P_pad), lambda n, c: (n, 0, 0)),
            scratch_shapes=scratch_shapes,
        ),
        compiler_params=pltpu.CompilerParams(
            dimension_semantics=("parallel", "arbitrary"),
            vmem_limit_bytes=budget,
        ),
    )(w_taps, x_flat, mask, gamma2, beta2)

    # (N, C_out, P_pad) -> (N, C_out, Ho, Wo): drop padding / per-row junk columns.
    return out[:, :, :P_cols].reshape(N, C_out, Ho, Ws)[:, :, :, :Wo]


def conv_block_reference(x, weight, gamma, beta, stride, compute_dtype=jnp.float32):
    # Pure-JAX reference for sanity checking.
    y = lax.conv_general_dilated(
        x.astype(compute_dtype), weight.astype(compute_dtype),
        window_strides=(stride, stride), padding="VALID",
        dimension_numbers=("NCHW", "OIHW", "NCHW"),
        preferred_element_type=jnp.float32)
    mean = jnp.mean(y, axis=(2, 3), keepdims=True)
    var = jnp.mean((y - mean) ** 2, axis=(2, 3), keepdims=True)
    y = (y - mean) * lax.rsqrt(var + EPS)
    y = y * gamma.reshape(1, -1, 1, 1) + beta.reshape(1, -1, 1, 1)
    return jnp.where(y >= 0, y, NEG_SLOPE * y)


if __name__ == "__main__":
    # Small shapes consistent with the module: batch=2, C_in=4, C_out=8, 16x16, stride=2.
    N, C_in, C_out, H, W, stride = 2, 4, 8, 16, 16, 2

    key = jax.random.PRNGKey(0)
    kx, kw, kg, kb = jax.random.split(key, 4)
    x = jax.random.normal(kx, (N, C_in, H, W), dtype=jnp.float32)
    weight = jax.random.normal(kw, (C_out, C_in, KSIZE, KSIZE), dtype=jnp.float32) * 0.1
    gamma = 1.0 + 0.1 * jax.random.normal(kg, (C_out,), dtype=jnp.float32)
    beta = 0.1 * jax.random.normal(kb, (C_out,), dtype=jnp.float32)

    out = jax.block_until_ready(conv_block(x, weight, gamma, beta, stride))

    # Apples-to-apples check: same bf16 operands, f32 accumulation.
    ref_bf16 = conv_block_reference(x, weight, gamma, beta, stride,
                                    compute_dtype=jnp.bfloat16)
    assert out.shape == ref_bf16.shape, (out.shape, ref_bf16.shape)
    assert jnp.allclose(out, ref_bf16, atol=3e-3, rtol=3e-3), \
        float(jnp.max(jnp.abs(out - ref_bf16)))

    # Loose sanity check against the full-precision PyTorch-equivalent math.
    ref_f32 = conv_block_reference(x, weight, gamma, beta, stride)
    assert jnp.allclose(out, ref_f32, atol=1e-1, rtol=1e-1), \
        float(jnp.max(jnp.abs(out - ref_f32)))

    print("KERNEL_OK")
</pallas_src>

<mosaic_0001>
module attributes {stable_mosaic.version = 11 : i64} {
  func.func @_convblock_kernel(%arg0: i32, %arg1: i32, %arg2: memref<16x8x4xbf16, #tpu.memory_space<vmem>>, %arg3: memref<1x4x4x256xbf16, #tpu.memory_space<vmem>>, %arg4: memref<1x128xf32, #tpu.memory_space<vmem>>, %arg5: memref<8x1xf32, #tpu.memory_space<vmem>>, %arg6: memref<8x1xf32, #tpu.memory_space<vmem>>, %arg7: memref<1x8x128xf32, #tpu.memory_space<vmem>>) attributes {dimension_semantics = [#tpu.dimension_semantics<parallel>, #tpu.dimension_semantics<arbitrary>], iteration_bounds = array<i64: 2, 1>, scalar_prefetch = 0 : i64, scratch_operands = 0 : i64, tpu.core_type = #tpu.core_type<tc>, window_params = [{pipeline_mode = #tpu.pipeline_mode<synchronous>, transform_indices = @transform_0, window_bounds = array<i64: 16, 8, 4>}, {transform_indices = @transform_1, window_bounds = array<i64: 1, 4, 4, 256>}, {pipeline_mode = #tpu.pipeline_mode<synchronous>, transform_indices = @transform_2, window_bounds = array<i64: 1, 128>}, {pipeline_mode = #tpu.pipeline_mode<synchronous>, transform_indices = @transform_3, window_bounds = array<i64: 8, 1>}, {pipeline_mode = #tpu.pipeline_mode<synchronous>, transform_indices = @transform_4, window_bounds = array<i64: 8, 1>}, {transform_indices = @transform_5, window_bounds = array<i64: 1, 8, 128>}]} {
    %c0_i32 = arith.constant 0 : i32
    %0 = arith.cmpi eq, %arg1, %c0_i32 : i32
    %1 = arith.extui %0 : i1 to i32
    %c0_i32_0 = arith.constant 0 : i32
    %2 = arith.cmpi ne, %1, %c0_i32_0 : i32
    scf.if %2 {
      %cst_210 = arith.constant 0.000000e+00 : f32
      %182 = vector.broadcast %cst_210 : f32 to vector<8x128xf32>
      %c0_211 = arith.constant 0 : index
      %c0_212 = arith.constant 0 : index
      %c0_213 = arith.constant 0 : index
      %183 = vector.load %arg7[%c0_211, %c0_212, %c0_213] : memref<1x8x128xf32, #tpu.memory_space<vmem>>, vector<1x8x128xf32>
      %184 = vector.shape_cast %183 : vector<1x8x128xf32> to vector<8x128xf32>
      %185 = vector.shape_cast %182 : vector<8x128xf32> to vector<1x8x128xf32>
      tpu.vector_store %arg7[%c0_211, %c0_212, %c0_213], %185 {strides = array<i32>} : memref<1x8x128xf32, #tpu.memory_space<vmem>>, vector<1x8x128xf32>,
    } else {
    }
    %c0 = arith.constant 0 : index
    %c0_1 = arith.constant 0 : index
    %c0_2 = arith.constant 0 : index
    %c0_3 = arith.constant 0 : index
    %3 = vector.load %arg3[%c0, %c0_1, %c0_2, %c0_3] : memref<1x4x4x256xbf16, #tpu.memory_space<vmem>>, vector<1x1x4x128xbf16>
    %4 = vector.shape_cast %3 : vector<1x1x4x128xbf16> to vector<4x128xbf16>
    %c0_4 = arith.constant 0 : index
    %c0_5 = arith.constant 0 : index
    %c0_6 = arith.constant 0 : index
    %5 = vector.load %arg2[%c0_4, %c0_5, %c0_6] : memref<16x8x4xbf16, #tpu.memory_space<vmem>>, vector<1x8x4xbf16>
    %6 = vector.shape_cast %5 : vector<1x8x4xbf16> to vector<8x4xbf16>
    %c0_7 = arith.constant 0 : index
    %c0_8 = arith.constant 0 : index
    %c0_9 = arith.constant 0 : index
    %7 = vector.load %arg7[%c0_7, %c0_8, %c0_9] : memref<1x8x128xf32, #tpu.memory_space<vmem>>, vector<1x8x128xf32>
    %8 = vector.shape_cast %7 : vector<1x8x128xf32> to vector<8x128xf32>
    %cst = arith.constant dense<0.000000e+00> : vector<8x128xf32>
    %9 = tpu.matmul %6, %4, %cst {dimension_numbers = #tpu.dot_dimension_numbers<[1], [0], [0], [1], [0, 0, 1, 1], [], []>} : vector<8x4xbf16>, vector<4x128xbf16>, vector<8x128xf32> -> vector<8x128xf32>
    %10 = arith.addf %8, %9 : vector<8x128xf32>
    %c0_10 = arith.constant 0 : index
    %c0_11 = arith.constant 0 : index
    %c0_12 = arith.constant 0 : index
    %11 = vector.load %arg7[%c0_10, %c0_11, %c0_12] : memref<1x8x128xf32, #tpu.memory_space<vmem>>, vector<1x8x128xf32>
    %12 = vector.shape_cast %11 : vector<1x8x128xf32> to vector<8x128xf32>
    %13 = vector.shape_cast %10 : vector<8x128xf32> to vector<1x8x128xf32>
    tpu.vector_store %arg7[%c0_10, %c0_11, %c0_12], %13 {strides = array<i32>} : memref<1x8x128xf32, #tpu.memory_space<vmem>>, vector<1x8x128xf32>,
    %c0_13 = arith.constant 0 : index
    %c1 = arith.constant 1 : index
    %c0_14 = arith.constant 0 : index
    %c0_15 = arith.constant 0 : index
    %14 = vector.load %arg3[%c0_13, %c1, %c0_14, %c0_15] : memref<1x4x4x256xbf16, #tpu.memory_space<vmem>>, vector<1x1x4x128xbf16>
    %15 = vector.shape_cast %14 : vector<1x1x4x128xbf16> to vector<4x128xbf16>
    %c1_16 = arith.constant 1 : index
    %c0_17 = arith.constant 0 : index
    %c0_18 = arith.constant 0 : index
    %16 = vector.load %arg2[%c1_16, %c0_17, %c0_18] : memref<16x8x4xbf16, #tpu.memory_space<vmem>>, vector<1x8x4xbf16>
    %17 = vector.shape_cast %16 : vector<1x8x4xbf16> to vector<8x4xbf16>
    %c0_19 = arith.constant 0 : index
    %c0_20 = arith.constant 0 : index
    %c0_21 = arith.constant 0 : index
    %18 = vector.load %arg7[%c0_19, %c0_20, %c0_21] : memref<1x8x128xf32, #tpu.memory_space<vmem>>, vector<1x8x128xf32>
    %19 = vector.shape_cast %18 : vector<1x8x128xf32> to vector<8x128xf32>
    %cst_22 = arith.constant dense<0.000000e+00> : vector<8x128xf32>
    %20 = tpu.matmul %17, %15, %cst_22 {dimension_numbers = #tpu.dot_dimension_numbers<[1], [0], [0], [1], [0, 0, 1, 1], [], []>} : vector<8x4xbf16>, vector<4x128xbf16>, vector<8x128xf32> -> vector<8x128xf32>
    %21 = arith.addf %19, %20 : vector<8x128xf32>
    %c0_23 = arith.constant 0 : index
    %c0_24 = arith.constant 0 : index
    %c0_25 = arith.constant 0 : index
    %22 = vector.load %arg7[%c0_23, %c0_24, %c0_25] : memref<1x8x128xf32, #tpu.memory_space<vmem>>, vector<1x8x128xf32>
    %23 = vector.shape_cast %22 : vector<1x8x128xf32> to vector<8x128xf32>
    %24 = vector.shape_cast %21 : vector<8x128xf32> to vector<1x8x128xf32>
    tpu.vector_store %arg7[%c0_23, %c0_24, %c0_25], %24 {strides = array<i32>} : memref<1x8x128xf32, #tpu.memory_space<vmem>>, vector<1x8x128xf32>,
    %c0_26 = arith.constant 0 : index
    %c0_27 = arith.constant 0 : index
    %c0_28 = arith.constant 0 : index
    %c1_29 = arith.constant 1 : index
    %25 = vector.load %arg3[%c0_26, %c0_27, %c0_28, %c1_29] : memref<1x4x4x256xbf16, #tpu.memory_space<vmem>>, vector<1x1x4x128xbf16>
    %26 = vector.shape_cast %25 : vector<1x1x4x128xbf16> to vector<4x128xbf16>
    %c2 = arith.constant 2 : index
    %c0_30 = arith.constant 0 : index
    %c0_31 = arith.constant 0 : index
    %27 = vector.load %arg2[%c2, %c0_30, %c0_31] : memref<16x8x4xbf16, #tpu.memory_space<vmem>>, vector<1x8x4xbf16>
    %28 = vector.shape_cast %27 : vector<1x8x4xbf16> to vector<8x4xbf16>
    %c0_32 = arith.constant 0 : index
    %c0_33 = arith.constant 0 : index
    %c0_34 = arith.constant 0 : index
    %29 = vector.load %arg7[%c0_32, %c0_33, %c0_34] : memref<1x8x128xf32, #tpu.memory_space<vmem>>, vector<1x8x128xf32>
    %30 = vector.shape_cast %29 : vector<1x8x128xf32> to vector<8x128xf32>
    %cst_35 = arith.constant dense<0.000000e+00> : vector<8x128xf32>
    %31 = tpu.matmul %28, %26, %cst_35 {dimension_numbers = #tpu.dot_dimension_numbers<[1], [0], [0], [1], [0, 0, 1, 1], [], []>} : vector<8x4xbf16>, vector<4x128xbf16>, vector<8x128xf32> -> vector<8x128xf32>
    %32 = arith.addf %30, %31 : vector<8x128xf32>
    %c0_36 = arith.constant 0 : index
    %c0_37 = arith.constant 0 : index
    %c0_38 = arith.constant 0 : index
    %33 = vector.load %arg7[%c0_36, %c0_37, %c0_38] : memref<1x8x128xf32, #tpu.memory_space<vmem>>, vector<1x8x128xf32>
    %34 = vector.shape_cast %33 : vector<1x8x128xf32> to vector<8x128xf32>
    %35 = vector.shape_cast %32 : vector<8x128xf32> to vector<1x8x128xf32>
    tpu.vector_store %arg7[%c0_36, %c0_37, %c0_38], %35 {strides = array<i32>} : memref<1x8x128xf32, #tpu.memory_space<vmem>>, vector<1x8x128xf32>,
    %c0_39 = arith.constant 0 : index
    %c1_40 = arith.constant 1 : index
    %c0_41 = arith.constant 0 : index
    %c1_42 = arith.constant 1 : index
    %36 = vector.load %arg3[%c0_39, %c1_40, %c0_41, %c1_42] : memref<1x4x4x256xbf16, #tpu.memory_space<vmem>>, vector<1x1x4x128xbf16>
    %37 = vector.shape_cast %36 : vector<1x1x4x128xbf16> to vector<4x128xbf16>
    %c3 = arith.constant 3 : index
    %c0_43 = arith.constant 0 : index
    %c0_44 = arith.constant 0 : index
    %38 = vector.load %arg2[%c3, %c0_43, %c0_44] : memref<16x8x4xbf16, #tpu.memory_space<vmem>>, vector<1x8x4xbf16>
    %39 = vector.shape_cast %38 : vector<1x8x4xbf16> to vector<8x4xbf16>
    %c0_45 = arith.constant 0 : index
    %c0_46 = arith.constant 0 : index
    %c0_47 = arith.constant 0 : index
    %40 = vector.load %arg7[%c0_45, %c0_46, %c0_47] : memref<1x8x128xf32, #tpu.memory_space<vmem>>, vector<1x8x128xf32>
    %41 = vector.shape_cast %40 : vector<1x8x128xf32> to vector<8x128xf32>
    %cst_48 = arith.constant dense<0.000000e+00> : vector<8x128xf32>
    %42 = tpu.matmul %39, %37, %cst_48 {dimension_numbers = #tpu.dot_dimension_numbers<[1], [0], [0], [1], [0, 0, 1, 1], [], []>} : vector<8x4xbf16>, vector<4x128xbf16>, vector<8x128xf32> -> vector<8x128xf32>
    %43 = arith.addf %41, %42 : vector<8x128xf32>
    %c0_49 = arith.constant 0 : index
    %c0_50 = arith.constant 0 : index
    %c0_51 = arith.constant 0 : index
    %44 = vector.load %arg7[%c0_49, %c0_50, %c0_51] : memref<1x8x128xf32, #tpu.memory_space<vmem>>, vector<1x8x128xf32>
    %45 = vector.shape_cast %44 : vector<1x8x128xf32> to vector<8x128xf32>
    %46 = vector.shape_cast %43 : vector<8x128xf32> to vector<1x8x128xf32>
    tpu.vector_store %arg7[%c0_49, %c0_50, %c0_51], %46 {strides = array<i32>} : memref<1x8x128xf32, #tpu.memory_space<vmem>>, vector<1x8x128xf32>,
    %c0_52 = arith.constant 0 : index
    %c2_53 = arith.constant 2 : index
    %c0_54 = arith.constant 0 : index
    %c0_55 = arith.constant 0 : index
    %47 = vector.load %arg3[%c0_52, %c2_53, %c0_54, %c0_55] : memref<1x4x4x256xbf16, #tpu.memory_space<vmem>>, vector<1x1x4x128xbf16>
    %48 = vector.shape_cast %47 : vector<1x1x4x128xbf16> to vector<4x128xbf16>
    %c4 = arith.constant 4 : index
    %c0_56 = arith.constant 0 : index
    %c0_57 = arith.constant 0 : index
    %49 = vector.load %arg2[%c4, %c0_56, %c0_57] : memref<16x8x4xbf16, #tpu.memory_space<vmem>>, vector<1x8x4xbf16>
    %50 = vector.shape_cast %49 : vector<1x8x4xbf16> to vector<8x4xbf16>
    %c0_58 = arith.constant 0 : index
    %c0_59 = arith.constant 0 : index
    %c0_60 = arith.constant 0 : index
    %51 = vector.load %arg7[%c0_58, %c0_59, %c0_60] : memref<1x8x128xf32, #tpu.memory_space<vmem>>, vector<1x8x128xf32>
    %52 = vector.shape_cast %51 : vector<1x8x128xf32> to vector<8x128xf32>
    %cst_61 = arith.constant dense<0.000000e+00> : vector<8x128xf32>
    %53 = tpu.matmul %50, %48, %cst_61 {dimension_numbers = #tpu.dot_dimension_numbers<[1], [0], [0], [1], [0, 0, 1, 1], [], []>} : vector<8x4xbf16>, vector<4x128xbf16>, vector<8x128xf32> -> vector<8x128xf32>
    %54 = arith.addf %52, %53 : vector<8x128xf32>
    %c0_62 = arith.constant 0 : index
    %c0_63 = arith.constant 0 : index
    %c0_64 = arith.constant 0 : index
    %55 = vector.load %arg7[%c0_62, %c0_63, %c0_64] : memref<1x8x128xf32, #tpu.memory_space<vmem>>, vector<1x8x128xf32>
    %56 = vector.shape_cast %55 : vector<1x8x128xf32> to vector<8x128xf32>
    %57 = vector.shape_cast %54 : vector<8x128xf32> to vector<1x8x128xf32>
    tpu.vector_store %arg7[%c0_62, %c0_63, %c0_64], %57 {strides = array<i32>} : memref<1x8x128xf32, #tpu.memory_space<vmem>>, vector<1x8x128xf32>,
    %c0_65 = arith.constant 0 : index
    %c3_66 = arith.constant 3 : index
    %c0_67 = arith.constant 0 : index
    %c0_68 = arith.constant 0 : index
    %58 = vector.load %arg3[%c0_65, %c3_66, %c0_67, %c0_68] : memref<1x4x4x256xbf16, #tpu.memory_space<vmem>>, vector<1x1x4x128xbf16>
    %59 = vector.shape_cast %58 : vector<1x1x4x128xbf16> to vector<4x128xbf16>
    %c5 = arith.constant 5 : index
    %c0_69 = arith.constant 0 : index
    %c0_70 = arith.constant 0 : index
    %60 = vector.load %arg2[%c5, %c0_69, %c0_70] : memref<16x8x4xbf16, #tpu.memory_space<vmem>>, vector<1x8x4xbf16>
    %61 = vector.shape_cast %60 : vector<1x8x4xbf16> to vector<8x4xbf16>
    %c0_71 = arith.constant 0 : index
    %c0_72 = arith.constant 0 : index
    %c0_73 = arith.constant 0 : index
    %62 = vector.load %arg7[%c0_71, %c0_72, %c0_73] : memref<1x8x128xf32, #tpu.memory_space<vmem>>, vector<1x8x128xf32>
    %63 = vector.shape_cast %62 : vector<1x8x128xf32> to vector<8x128xf32>
    %cst_74 = arith.constant dense<0.000000e+00> : vector<8x128xf32>
    %64 = tpu.matmul %61, %59, %cst_74 {dimension_numbers = #tpu.dot_dimension_numbers<[1], [0], [0], [1], [0, 0, 1, 1], [], []>} : vector<8x4xbf16>, vector<4x128xbf16>, vector<8x128xf32> -> vector<8x128xf32>
    %65 = arith.addf %63, %64 : vector<8x128xf32>
    %c0_75 = arith.constant 0 : index
    %c0_76 = arith.constant 0 : index
    %c0_77 = arith.constant 0 : index
    %66 = vector.load %arg7[%c0_75, %c0_76, %c0_77] : memref<1x8x128xf32, #tpu.memory_space<vmem>>, vector<1x8x128xf32>
    %67 = vector.shape_cast %66 : vector<1x8x128xf32> to vector<8x128xf32>
    %68 = vector.shape_cast %65 : vector<8x128xf32> to vector<1x8x128xf32>
    tpu.vector_store %arg7[%c0_75, %c0_76, %c0_77], %68 {strides = array<i32>} : memref<1x8x128xf32, #tpu.memory_space<vmem>>, vector<1x8x128xf32>,
    %c0_78 = arith.constant 0 : index
    %c2_79 = arith.constant 2 : index
    %c0_80 = arith.constant 0 : index
    %c1_81 = arith.constant 1 : index
    %69 = vector.load %arg3[%c0_78, %c2_79, %c0_80, %c1_81] : memref<1x4x4x256xbf16, #tpu.memory_space<vmem>>, vector<1x1x4x128xbf16>
    %70 = vector.shape_cast %69 : vector<1x1x4x128xbf16> to vector<4x128xbf16>
    %c6 = arith.constant 6 : index
    %c0_82 = arith.constant 0 : index
    %c0_83 = arith.constant 0 : index
    %71 = vector.load %arg2[%c6, %c0_82, %c0_83] : memref<16x8x4xbf16, #tpu.memory_space<vmem>>, vector<1x8x4xbf16>
    %72 = vector.shape_cast %71 : vector<1x8x4xbf16> to vector<8x4xbf16>
    %c0_84 = arith.constant 0 : index
    %c0_85 = arith.constant 0 : index
    %c0_86 = arith.constant 0 : index
    %73 = vector.load %arg7[%c0_84, %c0_85, %c0_86] : memref<1x8x128xf32, #tpu.memory_space<vmem>>, vector<1x8x128xf32>
    %74 = vector.shape_cast %73 : vector<1x8x128xf32> to vector<8x128xf32>
    %cst_87 = arith.constant dense<0.000000e+00> : vector<8x128xf32>
    %75 = tpu.matmul %72, %70, %cst_87 {dimension_numbers = #tpu.dot_dimension_numbers<[1], [0], [0], [1], [0, 0, 1, 1], [], []>} : vector<8x4xbf16>, vector<4x128xbf16>, vector<8x128xf32> -> vector<8x128xf32>
    %76 = arith.addf %74, %75 : vector<8x128xf32>
    %c0_88 = arith.constant 0 : index
    %c0_89 = arith.constant 0 : index
    %c0_90 = arith.constant 0 : index
    %77 = vector.load %arg7[%c0_88, %c0_89, %c0_90] : memref<1x8x128xf32, #tpu.memory_space<vmem>>, vector<1x8x128xf32>
    %78 = vector.shape_cast %77 : vector<1x8x128xf32> to vector<8x128xf32>
    %79 = vector.shape_cast %76 : vector<8x128xf32> to vector<1x8x128xf32>
    tpu.vector_store %arg7[%c0_88, %c0_89, %c0_90], %79 {strides = array<i32>} : memref<1x8x128xf32, #tpu.memory_space<vmem>>, vector<1x8x128xf32>,
    %c0_91 = arith.constant 0 : index
    %c3_92 = arith.constant 3 : index
    %c0_93 = arith.constant 0 : index
    %c1_94 = arith.constant 1 : index
    %80 = vector.load %arg3[%c0_91, %c3_92, %c0_93, %c1_94] : memref<1x4x4x256xbf16, #tpu.memory_space<vmem>>, vector<1x1x4x128xbf16>
    %81 = vector.shape_cast %80 : vector<1x1x4x128xbf16> to vector<4x128xbf16>
    %c7 = arith.constant 7 : index
    %c0_95 = arith.constant 0 : index
    %c0_96 = arith.constant 0 : index
    %82 = vector.load %arg2[%c7, %c0_95, %c0_96] : memref<16x8x4xbf16, #tpu.memory_space<vmem>>, vector<1x8x4xbf16>
    %83 = vector.shape_cast %82 : vector<1x8x4xbf16> to vector<8x4xbf16>
    %c0_97 = arith.constant 0 : index
    %c0_98 = arith.constant 0 : index
    %c0_99 = arith.constant 0 : index
    %84 = vector.load %arg7[%c0_97, %c0_98, %c0_99] : memref<1x8x128xf32, #tpu.memory_space<vmem>>, vector<1x8x128xf32>
    %85 = vector.shape_cast %84 : vector<1x8x128xf32> to vector<8x128xf32>
    %cst_100 = arith.constant dense<0.000000e+00> : vector<8x128xf32>
    %86 = tpu.matmul %83, %81, %cst_100 {dimension_numbers = #tpu.dot_dimension_numbers<[1], [0], [0], [1], [0, 0, 1, 1], [], []>} : vector<8x4xbf16>, vector<4x128xbf16>, vector<8x128xf32> -> vector<8x128xf32>
    %87 = arith.addf %85, %86 : vector<8x128xf32>
    %c0_101 = arith.constant 0 : index
    %c0_102 = arith.constant 0 : index
    %c0_103 = arith.constant 0 : index
    %88 = vector.load %arg7[%c0_101, %c0_102, %c0_103] : memref<1x8x128xf32, #tpu.memory_space<vmem>>, vector<1x8x128xf32>
    %89 = vector.shape_cast %88 : vector<1x8x128xf32> to vector<8x128xf32>
    %90 = vector.shape_cast %87 : vector<8x128xf32> to vector<1x8x128xf32>
    tpu.vector_store %arg7[%c0_101, %c0_102, %c0_103], %90 {strides = array<i32>} : memref<1x8x128xf32, #tpu.memory_space<vmem>>, vector<1x8x128xf32>,
    %c0_104 = arith.constant 0 : index
    %c0_105 = arith.constant 0 : index
    %c0_106 = arith.constant 0 : index
    %c8 = arith.constant 8 : index
    %91 = vector.load %arg3[%c0_104, %c0_105, %c0_106, %c8] : memref<1x4x4x256xbf16, #tpu.memory_space<vmem>>, vector<1x1x4x128xbf16>
    %92 = vector.shape_cast %91 : vector<1x1x4x128xbf16> to vector<4x128xbf16>
    %c8_107 = arith.constant 8 : index
    %c0_108 = arith.constant 0 : index
    %c0_109 = arith.constant 0 : index
    %93 = vector.load %arg2[%c8_107, %c0_108, %c0_109] : memref<16x8x4xbf16, #tpu.memory_space<vmem>>, vector<1x8x4xbf16>
    %94 = vector.shape_cast %93 : vector<1x8x4xbf16> to vector<8x4xbf16>
    %c0_110 = arith.constant 0 : index
    %c0_111 = arith.constant 0 : index
    %c0_112 = arith.constant 0 : index
    %95 = vector.load %arg7[%c0_110, %c0_111, %c0_112] : memref<1x8x128xf32, #tpu.memory_space<vmem>>, vector<1x8x128xf32>
    %96 = vector.shape_cast %95 : vector<1x8x128xf32> to vector<8x128xf32>
    %cst_113 = arith.constant dense<0.000000e+00> : vector<8x128xf32>
    %97 = tpu.matmul %94, %92, %cst_113 {dimension_numbers = #tpu.dot_dimension_numbers<[1], [0], [0], [1], [0, 0, 1, 1], [], []>} : vector<8x4xbf16>, vector<4x128xbf16>, vector<8x128xf32> -> vector<8x128xf32>
    %98 = arith.addf %96, %97 : vector<8x128xf32>
    %c0_114 = arith.constant 0 : index
    %c0_115 = arith.constant 0 : index
    %c0_116 = arith.constant 0 : index
    %99 = vector.load %arg7[%c0_114, %c0_115, %c0_116] : memref<1x8x128xf32, #tpu.memory_space<vmem>>, vector<1x8x128xf32>
    %100 = vector.shape_cast %99 : vector<1x8x128xf32> to vector<8x128xf32>
    %101 = vector.shape_cast %98 : vector<8x128xf32> to vector<1x8x128xf32>
    tpu.vector_store %arg7[%c0_114, %c0_115, %c0_116], %101 {strides = array<i32>} : memref<1x8x128xf32, #tpu.memory_space<vmem>>, vector<1x8x128xf32>,
    %c0_117 = arith.constant 0 : index
    %c1_118 = arith.constant 1 : index
    %c0_119 = arith.constant 0 : index
    %c8_120 = arith.constant 8 : index
    %102 = vector.load %arg3[%c0_117, %c1_118, %c0_119, %c8_120] : memref<1x4x4x256xbf16, #tpu.memory_space<vmem>>, vector<1x1x4x128xbf16>
    %103 = vector.shape_cast %102 : vector<1x1x4x128xbf16> to vector<4x128xbf16>
    %c9 = arith.constant 9 : index
    %c0_121 = arith.constant 0 : index
    %c0_122 = arith.constant 0 : index
    %104 = vector.load %arg2[%c9, %c0_121, %c0_122] : memref<16x8x4xbf16, #tpu.memory_space<vmem>>, vector<1x8x4xbf16>
    %105 = vector.shape_cast %104 : vector<1x8x4xbf16> to vector<8x4xbf16>
    %c0_123 = arith.constant 0 : index
    %c0_124 = arith.constant 0 : index
    %c0_125 = arith.constant 0 : index
    %106 = vector.load %arg7[%c0_123, %c0_124, %c0_125] : memref<1x8x128xf32, #tpu.memory_space<vmem>>, vector<1x8x128xf32>
    %107 = vector.shape_cast %106 : vector<1x8x128xf32> to vector<8x128xf32>
    %cst_126 = arith.constant dense<0.000000e+00> : vector<8x128xf32>
    %108 = tpu.matmul %105, %103, %cst_126 {dimension_numbers = #tpu.dot_dimension_numbers<[1], [0], [0], [1], [0, 0, 1, 1], [], []>} : vector<8x4xbf16>, vector<4x128xbf16>, vector<8x128xf32> -> vector<8x128xf32>
    %109 = arith.addf %107, %108 : vector<8x128xf32>
    %c0_127 = arith.constant 0 : index
    %c0_128 = arith.constant 0 : index
    %c0_129 = arith.constant 0 : index
    %110 = vector.load %arg7[%c0_127, %c0_128, %c0_129] : memref<1x8x128xf32, #tpu.memory_space<vmem>>, vector<1x8x128xf32>
    %111 = vector.shape_cast %110 : vector<1x8x128xf32> to vector<8x128xf32>
    %112 = vector.shape_cast %109 : vector<8x128xf32> to vector<1x8x128xf32>
    tpu.vector_store %arg7[%c0_127, %c0_128, %c0_129], %112 {strides = array<i32>} : memref<1x8x128xf32, #tpu.memory_space<vmem>>, vector<1x8x128xf32>,
    %c0_130 = arith.constant 0 : index
    %c0_131 = arith.constant 0 : index
    %c0_132 = arith.constant 0 : index
    %c9_133 = arith.constant 9 : index
    %113 = vector.load %arg3[%c0_130, %c0_131, %c0_132, %c9_133] : memref<1x4x4x256xbf16, #tpu.memory_space<vmem>>, vector<1x1x4x128xbf16>
    %114 = vector.shape_cast %113 : vector<1x1x4x128xbf16> to vector<4x128xbf16>
    %c10 = arith.constant 10 : index
    %c0_134 = arith.constant 0 : index
    %c0_135 = arith.constant 0 : index
    %115 = vector.load %arg2[%c10, %c0_134, %c0_135] : memref<16x8x4xbf16, #tpu.memory_space<vmem>>, vector<1x8x4xbf16>
    %116 = vector.shape_cast %115 : vector<1x8x4xbf16> to vector<8x4xbf16>
    %c0_136 = arith.constant 0 : index
    %c0_137 = arith.constant 0 : index
    %c0_138 = arith.constant 0 : index
    %117 = vector.load %arg7[%c0_136, %c0_137, %c0_138] : memref<1x8x128xf32, #tpu.memory_space<vmem>>, vector<1x8x128xf32>
    %118 = vector.shape_cast %117 : vector<1x8x128xf32> to vector<8x128xf32>
    %cst_139 = arith.constant dense<0.000000e+00> : vector<8x128xf32>
    %119 = tpu.matmul %116, %114, %cst_139 {dimension_numbers = #tpu.dot_dimension_numbers<[1], [0], [0], [1], [0, 0, 1, 1], [], []>} : vector<8x4xbf16>, vector<4x128xbf16>, vector<8x128xf32> -> vector<8x128xf32>
    %120 = arith.addf %118, %119 : vector<8x128xf32>
    %c0_140 = arith.constant 0 : index
    %c0_141 = arith.constant 0 : index
    %c0_142 = arith.constant 0 : index
    %121 = vector.load %arg7[%c0_140, %c0_141, %c0_142] : memref<1x8x128xf32, #tpu.memory_space<vmem>>, vector<1x8x128xf32>
    %122 = vector.shape_cast %121 : vector<1x8x128xf32> to vector<8x128xf32>
    %123 = vector.shape_cast %120 : vector<8x128xf32> to vector<1x8x128xf32>
    tpu.vector_store %arg7[%c0_140, %c0_141, %c0_142], %123 {strides = array<i32>} : memref<1x8x128xf32, #tpu.memory_space<vmem>>, vector<1x8x128xf32>,
    %c0_143 = arith.constant 0 : index
    %c1_144 = arith.constant 1 : index
    %c0_145 = arith.constant 0 : index
    %c9_146 = arith.constant 9 : index
    %124 = vector.load %arg3[%c0_143, %c1_144, %c0_145, %c9_146] : memref<1x4x4x256xbf16, #tpu.memory_space<vmem>>, vector<1x1x4x128xbf16>
    %125 = vector.shape_cast %124 : vector<1x1x4x128xbf16> to vector<4x128xbf16>
    %c11 = arith.constant 11 : index
    %c0_147 = arith.constant 0 : index
    %c0_148 = arith.constant 0 : index
    %126 = vector.load %arg2[%c11, %c0_147, %c0_148] : memref<16x8x4xbf16, #tpu.memory_space<vmem>>, vector<1x8x4xbf16>
    %127 = vector.shape_cast %126 : vector<1x8x4xbf16> to vector<8x4xbf16>
    %c0_149 = arith.constant 0 : index
    %c0_150 = arith.constant 0 : index
    %c0_151 = arith.constant 0 : index
    %128 = vector.load %arg7[%c0_149, %c0_150, %c0_151] : memref<1x8x128xf32, #tpu.memory_space<vmem>>, vector<1x8x128xf32>
    %129 = vector.shape_cast %128 : vector<1x8x128xf32> to vector<8x128xf32>
    %cst_152 = arith.constant dense<0.000000e+00> : vector<8x128xf32>
    %130 = tpu.matmul %127, %125, %cst_152 {dimension_numbers = #tpu.dot_dimension_numbers<[1], [0], [0], [1], [0, 0, 1, 1], [], []>} : vector<8x4xbf16>, vector<4x128xbf16>, vector<8x128xf32> -> vector<8x128xf32>
    %131 = arith.addf %129, %130 : vector<8x128xf32>
    %c0_153 = arith.constant 0 : index
    %c0_154 = arith.constant 0 : index
    %c0_155 = arith.constant 0 : index
    %132 = vector.load %arg7[%c0_153, %c0_154, %c0_155] : memref<1x8x128xf32, #tpu.memory_space<vmem>>, vector<1x8x128xf32>
    %133 = vector.shape_cast %132 : vector<1x8x128xf32> to vector<8x128xf32>
    %134 = vector.shape_cast %131 : vector<8x128xf32> to vector<1x8x128xf32>
    tpu.vector_store %arg7[%c0_153, %c0_154, %c0_155], %134 {strides = array<i32>} : memref<1x8x128xf32, #tpu.memory_space<vmem>>, vector<1x8x128xf32>,
    %c0_156 = arith.constant 0 : index
    %c2_157 = arith.constant 2 : index
    %c0_158 = arith.constant 0 : index
    %c8_159 = arith.constant 8 : index
    %135 = vector.load %arg3[%c0_156, %c2_157, %c0_158, %c8_159] : memref<1x4x4x256xbf16, #tpu.memory_space<vmem>>, vector<1x1x4x128xbf16>
    %136 = vector.shape_cast %135 : vector<1x1x4x128xbf16> to vector<4x128xbf16>
    %c12 = arith.constant 12 : index
    %c0_160 = arith.constant 0 : index
    %c0_161 = arith.constant 0 : index
    %137 = vector.load %arg2[%c12, %c0_160, %c0_161] : memref<16x8x4xbf16, #tpu.memory_space<vmem>>, vector<1x8x4xbf16>
    %138 = vector.shape_cast %137 : vector<1x8x4xbf16> to vector<8x4xbf16>
    %c0_162 = arith.constant 0 : index
    %c0_163 = arith.constant 0 : index
    %c0_164 = arith.constant 0 : index
    %139 = vector.load %arg7[%c0_162, %c0_163, %c0_164] : memref<1x8x128xf32, #tpu.memory_space<vmem>>, vector<1x8x128xf32>
    %140 = vector.shape_cast %139 : vector<1x8x128xf32> to vector<8x128xf32>
    %cst_165 = arith.constant dense<0.000000e+00> : vector<8x128xf32>
    %141 = tpu.matmul %138, %136, %cst_165 {dimension_numbers = #tpu.dot_dimension_numbers<[1], [0], [0], [1], [0, 0, 1, 1], [], []>} : vector<8x4xbf16>, vector<4x128xbf16>, vector<8x128xf32> -> vector<8x128xf32>
    %142 = arith.addf %140, %141 : vector<8x128xf32>
    %c0_166 = arith.constant 0 : index
    %c0_167 = arith.constant 0 : index
    %c0_168 = arith.constant 0 : index
    %143 = vector.load %arg7[%c0_166, %c0_167, %c0_168] : memref<1x8x128xf32, #tpu.memory_space<vmem>>, vector<1x8x128xf32>
    %144 = vector.shape_cast %143 : vector<1x8x128xf32> to vector<8x128xf32>
    %145 = vector.shape_cast %142 : vector<8x128xf32> to vector<1x8x128xf32>
    tpu.vector_store %arg7[%c0_166, %c0_167, %c0_168], %145 {strides = array<i32>} : memref<1x8x128xf32, #tpu.memory_space<vmem>>, vector<1x8x128xf32>,
    %c0_169 = arith.constant 0 : index
    %c3_170 = arith.constant 3 : index
    %c0_171 = arith.constant 0 : index
    %c8_172 = arith.constant 8 : index
    %146 = vector.load %arg3[%c0_169, %c3_170, %c0_171, %c8_172] : memref<1x4x4x256xbf16, #tpu.memory_space<vmem>>, vector<1x1x4x128xbf16>
    %147 = vector.shape_cast %146 : vector<1x1x4x128xbf16> to vector<4x128xbf16>
    %c13 = arith.constant 13 : index
    %c0_173 = arith.constant 0 : index
    %c0_174 = arith.constant 0 : index
    %148 = vector.load %arg2[%c13, %c0_173, %c0_174] : memref<16x8x4xbf16, #tpu.memory_space<vmem>>, vector<1x8x4xbf16>
    %149 = vector.shape_cast %148 : vector<1x8x4xbf16> to vector<8x4xbf16>
    %c0_175 = arith.constant 0 : index
    %c0_176 = arith.constant 0 : index
    %c0_177 = arith.constant 0 : index
    %150 = vector.load %arg7[%c0_175, %c0_176, %c0_177] : memref<1x8x128xf32, #tpu.memory_space<vmem>>, vector<1x8x128xf32>
    %151 = vector.shape_cast %150 : vector<1x8x128xf32> to vector<8x128xf32>
    %cst_178 = arith.constant dense<0.000000e+00> : vector<8x128xf32>
    %152 = tpu.matmul %149, %147, %cst_178 {dimension_numbers = #tpu.dot_dimension_numbers<[1], [0], [0], [1], [0, 0, 1, 1], [], []>} : vector<8x4xbf16>, vector<4x128xbf16>, vector<8x128xf32> -> vector<8x128xf32>
    %153 = arith.addf %151, %152 : vector<8x128xf32>
    %c0_179 = arith.constant 0 : index
    %c0_180 = arith.constant 0 : index
    %c0_181 = arith.constant 0 : index
    %154 = vector.load %arg7[%c0_179, %c0_180, %c0_181] : memref<1x8x128xf32, #tpu.memory_space<vmem>>, vector<1x8x128xf32>
    %155 = vector.shape_cast %154 : vector<1x8x128xf32> to vector<8x128xf32>
    %156 = vector.shape_cast %153 : vector<8x128xf32> to vector<1x8x128xf32>
    tpu.vector_store %arg7[%c0_179, %c0_180, %c0_181], %156 {strides = array<i32>} : memref<1x8x128xf32, #tpu.memory_space<vmem>>, vector<1x8x128xf32>,
    %c0_182 = arith.constant 0 : index
    %c2_183 = arith.constant 2 : index
    %c0_184 = arith.constant 0 : index
    %c9_185 = arith.constant 9 : index
    %157 = vector.load %arg3[%c0_182, %c2_183, %c0_184, %c9_185] : memref<1x4x4x256xbf16, #tpu.memory_space<vmem>>, vector<1x1x4x128xbf16>
    %158 = vector.shape_cast %157 : vector<1x1x4x128xbf16> to vector<4x128xbf16>
    %c14 = arith.constant 14 : index
    %c0_186 = arith.constant 0 : index
    %c0_187 = arith.constant 0 : index
    %159 = vector.load %arg2[%c14, %c0_186, %c0_187] : memref<16x8x4xbf16, #tpu.memory_space<vmem>>, vector<1x8x4xbf16>
    %160 = vector.shape_cast %159 : vector<1x8x4xbf16> to vector<8x4xbf16>
    %c0_188 = arith.constant 0 : index
    %c0_189 = arith.constant 0 : index
    %c0_190 = arith.constant 0 : index
    %161 = vector.load %arg7[%c0_188, %c0_189, %c0_190] : memref<1x8x128xf32, #tpu.memory_space<vmem>>, vector<1x8x128xf32>
    %162 = vector.shape_cast %161 : vector<1x8x128xf32> to vector<8x128xf32>
    %cst_191 = arith.constant dense<0.000000e+00> : vector<8x128xf32>
    %163 = tpu.matmul %160, %158, %cst_191 {dimension_numbers = #tpu.dot_dimension_numbers<[1], [0], [0], [1], [0, 0, 1, 1], [], []>} : vector<8x4xbf16>, vector<4x128xbf16>, vector<8x128xf32> -> vector<8x128xf32>
    %164 = arith.addf %162, %163 : vector<8x128xf32>
    %c0_192 = arith.constant 0 : index
    %c0_193 = arith.constant 0 : index
    %c0_194 = arith.constant 0 : index
    %165 = vector.load %arg7[%c0_192, %c0_193, %c0_194] : memref<1x8x128xf32, #tpu.memory_space<vmem>>, vector<1x8x128xf32>
    %166 = vector.shape_cast %165 : vector<1x8x128xf32> to vector<8x128xf32>
    %167 = vector.shape_cast %164 : vector<8x128xf32> to vector<1x8x128xf32>
    tpu.vector_store %arg7[%c0_192, %c0_193, %c0_194], %167 {strides = array<i32>} : memref<1x8x128xf32, #tpu.memory_space<vmem>>, vector<1x8x128xf32>,
    %c0_195 = arith.constant 0 : index
    %c3_196 = arith.constant 3 : index
    %c0_197 = arith.constant 0 : index
    %c9_198 = arith.constant 9 : index
    %168 = vector.load %arg3[%c0_195, %c3_196, %c0_197, %c9_198] : memref<1x4x4x256xbf16, #tpu.memory_space<vmem>>, vector<1x1x4x128xbf16>
    %169 = vector.shape_cast %168 : vector<1x1x4x128xbf16> to vector<4x128xbf16>
    %c15 = arith.constant 15 : index
    %c0_199 = arith.constant 0 : index
    %c0_200 = arith.constant 0 : index
    %170 = vector.load %arg2[%c15, %c0_199, %c0_200] : memref<16x8x4xbf16, #tpu.memory_space<vmem>>, vector<1x8x4xbf16>
    %171 = vector.shape_cast %170 : vector<1x8x4xbf16> to vector<8x4xbf16>
    %c0_201 = arith.constant 0 : index
    %c0_202 = arith.constant 0 : index
    %c0_203 = arith.constant 0 : index
    %172 = vector.load %arg7[%c0_201, %c0_202, %c0_203] : memref<1x8x128xf32, #tpu.memory_space<vmem>>, vector<1x8x128xf32>
    %173 = vector.shape_cast %172 : vector<1x8x128xf32> to vector<8x128xf32>
    %cst_204 = arith.constant dense<0.000000e+00> : vector<8x128xf32>
    %174 = tpu.matmul %171, %169, %cst_204 {dimension_numbers = #tpu.dot_dimension_numbers<[1], [0], [0], [1], [0, 0, 1, 1], [], []>} : vector<8x4xbf16>, vector<4x128xbf16>, vector<8x128xf32> -> vector<8x128xf32>
    %175 = arith.addf %173, %174 : vector<8x128xf32>
    %c0_205 = arith.constant 0 : index
    %c0_206 = arith.constant 0 : index
    %c0_207 = arith.constant 0 : index
    %176 = vector.load %arg7[%c0_205, %c0_206, %c0_207] : memref<1x8x128xf32, #tpu.memory_space<vmem>>, vector<1x8x128xf32>
    %177 = vector.shape_cast %176 : vector<1x8x128xf32> to vector<8x128xf32>
    %178 = vector.shape_cast %175 : vector<8x128xf32> to vector<1x8x128xf32>
    tpu.vector_store %arg7[%c0_205, %c0_206, %c0_207], %178 {strides = array<i32>} : memref<1x8x128xf32, #tpu.memory_space<vmem>>, vector<1x8x128xf32>,
    %c0_i32_208 = arith.constant 0 : i32
    %179 = arith.cmpi eq, %arg1, %c0_i32_208 : i32
    %180 = arith.extui %179 : i1 to i32
    %c0_i32_209 = arith.constant 0 : i32
    %181 = arith.cmpi ne, %180, %c0_i32_209 : i32
    scf.if %181 {
      %c0_210 = arith.constant 0 : index
      %c0_211 = arith.constant 0 : index
      %c0_212 = arith.constant 0 : index
      %182 = vector.load %arg7[%c0_210, %c0_211, %c0_212] : memref<1x8x128xf32, #tpu.memory_space<vmem>>, vector<1x8x128xf32>
      %183 = vector.shape_cast %182 : vector<1x8x128xf32> to vector<8x128xf32>
      %c0_213 = arith.constant 0 : index
      %c0_214 = arith.constant 0 : index
      %184 = vector.load %arg4[%c0_213, %c0_214] : memref<1x128xf32, #tpu.memory_space<vmem>>, vector<1x128xf32>
      %185 = vector.broadcast %184 : vector<1x128xf32> to vector<8x128xf32>
      %186 = arith.mulf %183, %185 : vector<8x128xf32>
      %cst_215 = arith.constant dense<0.000000e+00> : vector<8xf32>
      %187 = vector.multi_reduction <add>, %186, %cst_215 [1] : vector<8x128xf32> to vector<8xf32>
      %188 = vector.shape_cast %187 : vector<8xf32> to vector<8x1xf32>
      %cst_216 = arith.constant 0.0204081628 : f32
      %189 = vector.broadcast %cst_216 : f32 to vector<8x1xf32>
      %190 = arith.mulf %188, %189 : vector<8x1xf32>
      %191 = arith.mulf %186, %183 : vector<8x128xf32>
      %cst_217 = arith.constant dense<0.000000e+00> : vector<8xf32>
      %192 = vector.multi_reduction <add>, %191, %cst_217 [1] : vector<8x128xf32> to vector<8xf32>
      %193 = vector.shape_cast %192 : vector<8xf32> to vector<8x1xf32>
      %cst_218 = arith.constant 0.0204081628 : f32
      %194 = vector.broadcast %cst_218 : f32 to vector<8x1xf32>
      %195 = arith.mulf %193, %194 : vector<8x1xf32>
      %196 = arith.mulf %190, %190 : vector<8x1xf32>
      %197 = arith.subf %195, %196 : vector<8x1xf32>
      %c0_219 = arith.constant 0 : index
      %c0_220 = arith.constant 0 : index
      %198 = vector.load %arg5[%c0_219, %c0_220] : memref<8x1xf32, #tpu.memory_space<vmem>>, vector<8x1xf32>
      %cst_221 = arith.constant 9.99999974E-6 : f32
      %199 = vector.broadcast %cst_221 : f32 to vector<8x1xf32>
      %200 = arith.addf %197, %199 : vector<8x1xf32>
      %201 = math.rsqrt %200 : vector<8x1xf32>
      %202 = arith.mulf %198, %201 : vector<8x1xf32>
      %c0_222 = arith.constant 0 : index
      %c0_223 = arith.constant 0 : index
      %203 = vector.load %arg6[%c0_222, %c0_223] : memref<8x1xf32, #tpu.memory_space<vmem>>, vector<8x1xf32>
      %204 = arith.mulf %190, %202 : vector<8x1xf32>
      %205 = arith.subf %203, %204 : vector<8x1xf32>
      %206 = vector.broadcast %202 : vector<8x1xf32> to vector<8x128xf32>
      %207 = arith.mulf %183, %206 : vector<8x128xf32>
      %208 = vector.broadcast %205 : vector<8x1xf32> to vector<8x128xf32>
      %209 = arith.addf %207, %208 : vector<8x128xf32>
      %cst_224 = arith.constant 2.000000e-01 : f32
      %210 = vector.broadcast %cst_224 : f32 to vector<8x128xf32>
      %211 = arith.mulf %210, %209 : vector<8x128xf32>
      %212 = arith.maximumf %209, %211 : vector<8x128xf32>
      %c0_225 = arith.constant 0 : index
      %c0_226 = arith.constant 0 : index
      %c0_227 = arith.constant 0 : index
      %213 = vector.load %arg7[%c0_225, %c0_226, %c0_227] : memref<1x8x128xf32, #tpu.memory_space<vmem>>, vector<1x8x128xf32>
      %214 = vector.shape_cast %213 : vector<1x8x128xf32> to vector<8x128xf32>
      %215 = vector.shape_cast %212 : vector<8x128xf32> to vector<1x8x128xf32>
      tpu.vector_store %arg7[%c0_225, %c0_226, %c0_227], %215 {strides = array<i32>} : memref<1x8x128xf32, #tpu.memory_space<vmem>>, vector<1x8x128xf32>,
    } else {
    }
    return
  }
  func.func @transform_0(%arg0: i32, %arg1: i32) -> (i32, i32, i32) {
    %c0_i32 = arith.constant 0 : i32
    %c0_i32_0 = arith.constant 0 : i32
    %c0_i32_1 = arith.constant 0 : i32
    %c0_i32_2 = arith.constant 0 : i32
    return %c0_i32, %c0_i32_0, %c0_i32_1 : i32, i32, i32
  }
  func.func @transform_1(%arg0: i32, %arg1: i32) -> (i32, i32, i32, i32) {
    %c0_i32 = arith.constant 0 : i32
    %c0_i32_0 = arith.constant 0 : i32
    %c0_i32_1 = arith.constant 0 : i32
    return %arg0, %c0_i32, %arg1, %c0_i32_0 : i32, i32, i32, i32
  }
  func.func @transform_2(%arg0: i32, %arg1: i32) -> (i32, i32) {
    %c0_i32 = arith.constant 0 : i32
    %c0_i32_0 = arith.constant 0 : i32
    %c0_i32_1 = arith.constant 0 : i32
    return %c0_i32, %c0_i32_0 : i32, i32
  }
  func.func @transform_3(%arg0: i32, %arg1: i32) -> (i32, i32) {
    %c0_i32 = arith.constant 0 : i32
    %c0_i32_0 = arith.constant 0 : i32
    %c0_i32_1 = arith.constant 0 : i32
    return %c0_i32, %c0_i32_0 : i32, i32
  }
  func.func @transform_4(%arg0: i32, %arg1: i32) -> (i32, i32) {
    %c0_i32 = arith.constant 0 : i32
    %c0_i32_0 = arith.constant 0 : i32
    %c0_i32_1 = arith.constant 0 : i32
    return %c0_i32, %c0_i32_0 : i32, i32
  }
  func.func @transform_5(%arg0: i32, %arg1: i32) -> (i32, i32, i32) {
    %c0_i32 = arith.constant 0 : i32
    %c0_i32_0 = arith.constant 0 : i32
    %c0_i32_1 = arith.constant 0 : i32
    return %arg0, %c0_i32, %c0_i32_0 : i32, i32, i32
  }
}

</mosaic_0001>

<llo_original>
// kernel: tpu_custom_call.1
$region0: #{tpu_custom_call.1}
  #allocation0 [shape = 'u32[]', space=smem, size = 0x4, offset = 0x4, fixed_abs, tag = 'smem constant byte address 0x4 - core index']
  #allocation1 [shape = 'u32[72,128]{1,0:T(1,128)}', space=vmem, size = 0x9000, scoped, tag = 'internal scratch']
  %s0 = inlined_call_operand.vmem [shape: bf16[16,8,4], index: 0, kind: input, shape index: {}]
  %s1 = inlined_call_operand.vmem [shape: bf16[2,4,4,256], index: 1, kind: input, shape index: {}]
  %s2 = inlined_call_operand.vmem [shape: f32[1,128], index: 2, kind: input, shape index: {}]
  %s3 = inlined_call_operand.vmem [shape: f32[8,1], index: 3, kind: input, shape index: {}]
  %s4 = inlined_call_operand.vmem [shape: f32[8,1], index: 4, kind: input, shape index: {}]
  %s5 = inlined_call_operand.hbm [shape: f32[2,8,128], index: 5, kind: output, shape index: {}]
  %s6 = sld [smem:[#allocation0]]
  $region61: #{tpu_custom_call.1} parent=0
    _
  %s8 = ssub.s32 1, %s6
  %s9 = scalar_select 0, %s8, %s6
  $region1: #{tpu_custom_call.1} parent=0
    #allocation2 [shape = 'u8[8192]{0}', space=vmem, size = 0x2000, scoped, tag = 'output window, operand 0']
    #allocation3 [shape = 's32[2]{0}', space=sflag, size = 0x8, scoped, tag = 'scoped memory for tpu_custom_call.1']
    %10 = vsyncpa [#allocation3], 0
    %s11 = scalar_lea.sflag [#allocation3], 1
    %12 = vsyncpa %s11, 0
    loop: start=0, step=1, limit=4
    $region2: #{tpu_custom_call.1} parent=1 // loop_pre_header
      _
    $region3: #{tpu_custom_call.1} parent=1 // loop_header
      %s14 = sphi 0, %s18
      %p15 = scmp.ge.s32.totalorder %s14, 4
      %s21 = sphi 0, %s33
      %s22 = sphi 0, %s29
      %s23 = sphi 0, %s21
      %s24 = sphi 0, %s22
      %s25 = sphi 0, %s23
      %s26 = sphi 0, %s24
      %s34 = sphi 0, %s34
      %s36 = sphi 0, %s34
      %s37 = sphi 0, %s36
      %s51 = sphi 0, %s37
      %s59 = sphi 0, %s61
      %s62 = sphi 0, %s59
      %s63 = sphi 0, %s62
      %s79 = sphi 0, %s63
      %s83 = sphi 0, %s83
      %s85 = sphi 0, %s83
      %s86 = sphi 0, %s85
      %s100 = sphi 0, %s86
      %s104 = sphi 0, %s104
      %s106 = sphi 0, %s104
      %s107 = sphi 0, %s106
      %s121 = sphi 0, %s107
      %s125 = sphi 0, %s125
      %s127 = sphi 0, %s125
      %s128 = sphi 0, %s127
      %s142 = sphi 0, %s128
      %s148 = sphi 0, %s150
      %s151 = sphi 0, %s148
      %s152 = sphi 0, %s151
      %s168 = sphi 0, %s152
    $region4: #{tpu_custom_call.1} parent=1 // loop_header_branch
      %17 = sbr.rel (%p15) target = $region8
    $region5: #{tpu_custom_call.1} parent=1 // loop_body
      %s19 = ssub.s32 %s14, 1
      %s20 = ssub.s32 %s14, 2
      %s27 = sadd.s32 1, %s22
      %p28 = scmp.ge.s32.totalorder %s27, 1
      %s29 = scalar_select %p28, 0, %s27
      %s30 = sadd.s32 1, %s21
      %s31 = scalar_select %p28, %s30, %s21
      %p32 = scmp.ge.s32.totalorder %s31, 2
      %s33 = scalar_select %p32, 0, %s31
      %s35 = sadd.s32 %s34, 1
      %p38 = scmp.eq.s32.totalorder %s14, 1
      %p39 = scmp.ne.s32.totalorder %s34, %s36
      %p40 = scmp.eq.s32.totalorder %s14, 0
      %p41 = por %p39, %p40
      %p42 = scmp.ne.s32.totalorder %s34, %s36
      %p43 = scmp.eq.s32.totalorder %s19, 1
      %p44 = por %p42, %p43
      %p45 = scmp.ne.s32.totalorder %s36, %s37
      %p46 = scmp.eq.s32.totalorder %s19, 0
      %p47 = por %p45, %p46
      %p48 = scmp.ne.s32.totalorder %s36, %s37
      %p49 = scmp.eq.s32.totalorder %s20, 1
      %p50 = por %p48, %p49
      %p52 = scmp.ne.s32.totalorder %s37, %s51
      %p53 = scmp.eq.s32.totalorder %s20, 0
      %p54 = por %p52, %p53
      %s55 = ssub.s32 %s21, %s33
      %s56 = ssub.s32 %s22, %s29
      %s57 = sor.u32 %s55, %s56
      %p58 = scmp.eq.s32.totalorder %s57, 0
      %s60 = sadd.s32 %s59, 1
      %s61 = scalar_select %p58, %s59, %s60
      %p64 = pneg %p58
      %p65 = scmp.eq.s32.totalorder %s14, 1
      %p66 = por %p64, %p65
      %p67 = scmp.ne.s32.totalorder %s59, %s62
      %p68 = scmp.eq.s32.totalorder %s14, 0
      %p69 = por %p67, %p68
      %p70 = scmp.ne.s32.totalorder %s59, %s62
      %p71 = scmp.eq.s32.totalorder %s19, 1
      %p72 = por %p70, %p71
      %p73 = scmp.ne.s32.totalorder %s62, %s63
      %p74 = scmp.eq.s32.totalorder %s19, 0
      %p75 = por %p73, %p74
      %p76 = scmp.ne.s32.totalorder %s62, %s63
      %p77 = scmp.eq.s32.totalorder %s20, 1
      %p78 = por %p76, %p77
      %p80 = scmp.ne.s32.totalorder %s63, %s79
      %p81 = scmp.eq.s32.totalorder %s20, 0
      %p82 = por %p80, %p81
      %s84 = sadd.s32 %s83, 1
      %p87 = scmp.eq.s32.totalorder %s14, 1
      %p88 = scmp.ne.s32.totalorder %s83, %s85
      %p89 = scmp.eq.s32.totalorder %s14, 0
      %p90 = por %p88, %p89
      %p91 = scmp.ne.s32.totalorder %s83, %s85
      %p92 = scmp.eq.s32.totalorder %s19, 1
      %p93 = por %p91, %p92
      %p94 = scmp.ne.s32.totalorder %s85, %s86
      %p95 = scmp.eq.s32.totalorder %s19, 0
      %p96 = por %p94, %p95
      %p97 = scmp.ne.s32.totalorder %s85, %s86
      %p98 = scmp.eq.s32.totalorder %s20, 1
      %p99 = por %p97, %p98
      %p101 = scmp.ne.s32.totalorder %s86, %s100
      %p102 = scmp.eq.s32.totalorder %s20, 0
      %p103 = por %p101, %p102
      %s105 = sadd.s32 %s104, 1
      %p108 = scmp.eq.s32.totalorder %s14, 1
      %p109 = scmp.ne.s32.totalorder %s104, %s106
      %p110 = scmp.eq.s32.totalorder %s14, 0
      %p111 = por %p109, %p110
      %p112 = scmp.ne.s32.totalorder %s104, %s106
      %p113 = scmp.eq.s32.totalorder %s19, 1
      %p114 = por %p112, %p113
      %p115 = scmp.ne.s32.totalorder %s106, %s107
      %p116 = scmp.eq.s32.totalorder %s19, 0
      %p117 = por %p115, %p116
      %p118 = scmp.ne.s32.totalorder %s106, %s107
      %p119 = scmp.eq.s32.totalorder %s20, 1
      %p120 = por %p118, %p119
      %p122 = scmp.ne.s32.totalorder %s107, %s121
      %p123 = scmp.eq.s32.totalorder %s20, 0
      %p124 = por %p122, %p123
      %s126 = sadd.s32 %s125, 1
      %p129 = scmp.eq.s32.totalorder %s14, 1
      %p130 = scmp.ne.s32.totalorder %s125, %s127
      %p131 = scmp.eq.s32.totalorder %s14, 0
      %p132 = por %p130, %p131
      %p133 = scmp.ne.s32.totalorder %s125, %s127
      %p134 = scmp.eq.s32.totalorder %s19, 1
      %p135 = por %p133, %p134
      %p136 = scmp.ne.s32.totalorder %s127, %s128
      %p137 = scmp.eq.s32.totalorder %s19, 0
      %p138 = por %p136, %p137
      %p139 = scmp.ne.s32.totalorder %s127, %s128
      %p140 = scmp.eq.s32.totalorder %s20, 1
      %p141 = por %p139, %p140
      %p143 = scmp.ne.s32.totalorder %s128, %s142
      %p144 = scmp.eq.s32.totalorder %s20, 0
      %p145 = por %p143, %p144
      %s146 = ssub.s32 %s21, %s33
      %p147 = scmp.eq.s32.totalorder %s146, 0
      %s149 = sadd.s32 %s148, 1
      %s150 = scalar_select %p147, %s148, %s149
      %p153 = pneg %p147
      %p154 = scmp.eq.s32.totalorder %s14, 1
      %p155 = por %p153, %p154
      %p156 = scmp.ne.s32.totalorder %s148, %s151
      %p157 = scmp.eq.s32.totalorder %s14, 0
      %p158 = por %p156, %p157
      %p159 = scmp.ne.s32.totalorder %s148, %s151
      %p160 = scmp.eq.s32.totalorder %s19, 1
      %p161 = por %p159, %p160
      %p162 = scmp.ne.s32.totalorder %s151, %s152
      %p163 = scmp.eq.s32.totalorder %s19, 0
      %p164 = por %p162, %p163
      %p165 = scmp.ne.s32.totalorder %s151, %s152
      %p166 = scmp.eq.s32.totalorder %s20, 1
      %p167 = por %p165, %p166
      %p169 = scmp.ne.s32.totalorder %s152, %s168
      %p170 = scmp.eq.s32.totalorder %s20, 0
      %p171 = por %p169, %p170
      %p172 = scmp.le.s32.totalorder 1, %s14
      %p173 = scmp.lt.s32.totalorder %s14, 3
      %p174 = pnand %p172, %p173
      %p175 = pneg %p174
      // Predicated region
      $region9: #{tpu_custom_call.1} parent=5 // pred_check
        _
      $region10: #{tpu_custom_call.1} parent=5 // pred_check_branch
        %177 = sbr.rel (%p174) target = $region12
      $region11: #{tpu_custom_call.1} parent=5 // pred_region
        %s178 = ssub.s32 %s14, 1
        // Predicated region
        $region13: #{tpu_custom_call.1} parent=11 // pred_check
          %p179 = pneg %p47
        $region14: #{tpu_custom_call.1} parent=11 // pred_check_branch
          %181 = sbr.rel (%p179) target = $region16
        $region15: #{tpu_custom_call.1} parent=11 // pred_region
          _
        $region16: #{tpu_custom_call.1} parent=11 // pred_fallthru
          _
        // Predicated region
        $region17: #{tpu_custom_call.1} parent=11 // pred_check
          %p182 = pneg %p96
        $region18: #{tpu_custom_call.1} parent=11 // pred_check_branch
          %184 = sbr.rel (%p182) target = $region20
        $region19: #{tpu_custom_call.1} parent=11 // pred_region
          _
        $region20: #{tpu_custom_call.1} parent=11 // pred_fallthru
          _
        // Predicated region
        $region21: #{tpu_custom_call.1} parent=11 // pred_check
          %p185 = pneg %p117
        $region22: #{tpu_custom_call.1} parent=11 // pred_check_branch
          %187 = sbr.rel (%p185) target = $region24
        $region23: #{tpu_custom_call.1} parent=11 // pred_region
          _
        $region24: #{tpu_custom_call.1} parent=11 // pred_fallthru
          _
        // Predicated region
        $region25: #{tpu_custom_call.1} parent=11 // pred_check
          %p188 = pneg %p138
        $region26: #{tpu_custom_call.1} parent=11 // pred_check_branch
          %190 = sbr.rel (%p188) target = $region28
        $region27: #{tpu_custom_call.1} parent=11 // pred_region
          _
        $region28: #{tpu_custom_call.1} parent=11 // pred_fallthru
          _
      $region12: #{tpu_custom_call.1} parent=5 // pred_fallthru
        _
      %p191 = scmp.lt.s32.totalorder %s14, 2
      // Predicated region
      $region29: #{tpu_custom_call.1} parent=5 // pred_check
        %p192 = pneg %p191
      $region30: #{tpu_custom_call.1} parent=5 // pred_check_branch
        %194 = sbr.rel (%p192) target = $region32
      $region31: #{tpu_custom_call.1} parent=5 // pred_region
        // Predicated region
        $region33: #{tpu_custom_call.1} parent=31 // pred_check
          %p195 = pneg %p69
        $region34: #{tpu_custom_call.1} parent=31 // pred_check_branch
          %197 = sbr.rel (%p195) target = $region36
        $region35: #{tpu_custom_call.1} parent=31 // pred_region
          %p198 = scmp.lt.s32.totalorder %s21, 1
          %s199 = scalar_select %p198, %s21, 1
          %p200 = scmp.lt.s32.totalorder %s22, 0
          %s201 = scalar_select %p200, %s22, 0
          %s202 = smul.addr %s201, 2
          %s203 = smul.addr %s199, 8
          %s204 = sadd.s32 %s202, %s203
          %s205 = smul.addr %s204, 2
          %s206 = scalar_lea.vmem %s1, %s205
        $region36: #{tpu_custom_call.1} parent=31 // pred_fallthru
          _
      $region32: #{tpu_custom_call.1} parent=5 // pred_fallthru
        _
      %p207 = scmp.le.s32.totalorder 1, %s14
      %p208 = scmp.lt.s32.totalorder %s14, 3
      %p209 = pnand %p207, %p208
      %p210 = pneg %p209
      // Predicated region
      $region37: #{tpu_custom_call.1} parent=5 // pred_check
        _
      $region38: #{tpu_custom_call.1} parent=5 // pred_check_branch
        %212 = sbr.rel (%p209) target = $region40
      $region39: #{tpu_custom_call.1} parent=5 // pred_region
        %s213 = ssub.s32 %s14, 1
        %p214 = pneg %p47
        %p215 = pneg %p44
        %p216 = scmp.lt.s32.totalorder %s23, 1
        %s217 = scalar_select %p216, %s23, 1
        %p218 = scmp.lt.s32.totalorder %s24, 0
        %s219 = scalar_select %p218, %s24, 0
        %s220 = smul.addr %s219, 2
        %s221 = smul.addr %s217, 8
        %s222 = sadd.s32 %s220, %s221
        %s223 = smul.addr %s222, 2
        %s224 = scalar_lea.vmem %s1, %s223
        %p225 = pneg %p75
        %p226 = pneg %p72
        %p227 = pneg %p96
        %p228 = pneg %p93
        %p229 = pneg %p117
        %p230 = pneg %p114
        %p231 = pneg %p138
        %p232 = pneg %p135
        %p233 = pneg %p164
        %p234 = pneg %p161
        %s235 = sand.u32 %s151, 1
        %s236 = scalar_lea.sflag [#allocation3], %s235
        %s237 = sand.u32 %s151, 1
        %s238 = smul.addr %s237, 8
        %s239 = scalar_lea.vmem [#allocation2], %s238
        %p240 = scmp.lt.s32.totalorder %s23, 1
        %s241 = scalar_select %p240, %s23, 1
        %p242 = scmp.lt.s32.totalorder %s24, 0
        %s243 = scalar_select %p242, %s24, 0
        %s244 = smul.addr %s243, 2
        %s245 = smul.addr %s241, 8
        %s246 = sadd.s32 %s244, %s245
        %s247 = smul.addr %s246, 2
        %s248 = scalar_lea.vmem %s1, %s247
        %p250 = scmp.eq.s32.totalorder %s24, 0
        // Predicated region
        $region41: #{tpu_custom_call.1} parent=39 // pred_check
          %p251 = pneg %p250
        $region42: #{tpu_custom_call.1} parent=39 // pred_check_branch
          %253 = sbr.rel (%p251) target = $region44
        $region43: #{tpu_custom_call.1} parent=39 // pred_region
          %254 = vst [vmem:[%s239] sm:$0xff] 0.0
        $region44: #{tpu_custom_call.1} parent=39 // pred_fallthru
          _
        %v255 = vld [vmem:[%s248] sm:$0x3]
        %v256 = vld [vmem:[%s0] sm:$0xf]
        %v257 = vld [vmem:[%s239] sm:$0xff]
        %vm258 = vcmask 31744
        %v260 = vsel %vm258, %v256, 0
        %vm262 = vcmask 1041408
        %v264 = vsel %vm262, %v255, 0
        %266 = vmatpush.bf16.msra.mxu0 0
        %267 = vmatpush.bf16.msra.mxu0 0
        %268 = vmatpush.bf16.msra.mxu0 0
        %269 = vmatpush.bf16.msra.mxu0 0
        %270 = vmatpush.bf16.msra.mxu0 0
        %271 = vmatpush.bf16.msra.mxu0 0
        %272 = vmatpush.bf16.msra.mxu0 0
        %273 = vmatpush.bf16.msra.mxu0 %v264
        %274 = vmatmul.bf16.gmra.mxu0 %v260
        %v275 = vpop.f32.mrf.mxu0
        %v276 = vadd.f32 0.0, %v275
        %v277 = vpop.f32.mrf.mxu0
        %278 = vdwg.mxu0
        %v279 = vadd.f32 %v257, %v276
        %280 = vst [vmem:[%s239] sm:$0xff] %v279
        %s281 = scalar_lea.vmem %s248, 4
        %v282 = vld [vmem:[%s281] sm:$0x3]
        %s283 = scalar_lea.vmem %s0, 4
        %v284 = vld [vmem:[%s283] sm:$0xf]
        %v285 = vld [vmem:[%s239] sm:$0xff]
        %v287 = vsel %vm258, %v284, 0
        %v290 = vsel %vm262, %v282, 0
        %292 = vmatpush.bf16.msra.mxu0 0
        %293 = vmatpush.bf16.msra.mxu0 0
        %294 = vmatpush.bf16.msra.mxu0 0
        %295 = vmatpush.bf16.msra.mxu0 0
        %296 = vmatpush.bf16.msra.mxu0 0
        %297 = vmatpush.bf16.msra.mxu0 0
        %298 = vmatpush.bf16.msra.mxu0 0
        %299 = vmatpush.bf16.msra.mxu0 %v290
        %300 = vmatmul.bf16.gmra.mxu0 %v287
        %v301 = vpop.f32.mrf.mxu0
        %v302 = vadd.f32 0.0, %v301
        %v303 = vpop.f32.mrf.mxu0
        %304 = vdwg.mxu0
        %v305 = vadd.f32 %v285, %v302
        %306 = vst [vmem:[%s239] sm:$0xff] %v305
        %v307 = vld [vmem:[%s248] sm:$0xf]
        %s308 = scalar_lea.vmem %s0, 8
        %v309 = vld [vmem:[%s308] sm:$0xf]
        %v310 = vld [vmem:[%s239] sm:$0xff]
        %312 = vst [vmem:[#allocation1] ss:$4 sm:$0xff] %v307
        %v313 = vld.sshfl [vmem:[#allocation1] sm:$0xff pattern:$0x73625140]
        %v315 = vld.sshfl [vmem:[#allocation1 + $0x8] sm:$0xff pattern:$0x73625140]
        %317 = vrot.lane.b32.xlu0 %v313, 127
        %v318 = vpop.permute.xlu0 %317
        %319 = vrot.lane.b32.xlu0 %v315, 127
        %v320 = vpop.permute.xlu0 %319
        %vm321 = vcmask 1039360
        %v322 = vsel %vm321, %v318, %v320
        %v324 = vsel %vm258, %v309, 0
        %v327 = vsel %vm262, %v322, 0
        %329 = vmatpush.bf16.msra.mxu0 0
        %330 = vmatpush.bf16.msra.mxu0 0
        %331 = vmatpush.bf16.msra.mxu0 0
        %332 = vmatpush.bf16.msra.mxu0 0
        %333 = vmatpush.bf16.msra.mxu0 0
        %334 = vmatpush.bf16.msra.mxu0 0
        %335 = vmatpush.bf16.msra.mxu0 0
        %336 = vmatpush.bf16.msra.mxu0 %v327
        %337 = vmatmul.bf16.gmra.mxu0 %v324
        %v338 = vpop.f32.mrf.mxu0
        %v339 = vadd.f32 0.0, %v338
        %v340 = vpop.f32.mrf.mxu0
        %341 = vdwg.mxu0
        %v342 = vadd.f32 %v310, %v339
        %343 = vst [vmem:[%s239] sm:$0xff] %v342
        %v344 = vld [vmem:[%s281] sm:$0xf]
        %s345 = scalar_lea.vmem %s0, 12
        %v346 = vld [vmem:[%s345] sm:$0xf]
        %v347 = vld [vmem:[%s239] sm:$0xff]
        %349 = vst [vmem:[#allocation1] ss:$4 sm:$0xff] %v344
        %v350 = vld.sshfl [vmem:[#allocation1] sm:$0xff pattern:$0x73625140]
        %v352 = vld.sshfl [vmem:[#allocation1 + $0x8] sm:$0xff pattern:$0x73625140]
        %354 = vrot.lane.b32.xlu0 %v350, 127
        %v355 = vpop.permute.xlu0 %354
        %356 = vrot.lane.b32.xlu0 %v352, 127
        %v357 = vpop.permute.xlu0 %356
        %v358 = vsel %vm321, %v355, %v357
        %v360 = vsel %vm258, %v346, 0
        %v363 = vsel %vm262, %v358, 0
        %365 = vmatpush.bf16.msra.mxu0 0
        %366 = vmatpush.bf16.msra.mxu0 0
        %367 = vmatpush.bf16.msra.mxu0 0
        %368 = vmatpush.bf16.msra.mxu0 0
        %369 = vmatpush.bf16.msra.mxu0 0
        %370 = vmatpush.bf16.msra.mxu0 0
        %371 = vmatpush.bf16.msra.mxu0 0
        %372 = vmatpush.bf16.msra.mxu0 %v363
        %373 = vmatmul.bf16.gmra.mxu0 %v360
        %v374 = vpop.f32.mrf.mxu0
        %v375 = vadd.f32 0.0, %v374
        %v376 = vpop.f32.mrf.mxu0
        %377 = vdwg.mxu0
        %v378 = vadd.f32 %v347, %v375
        %379 = vst [vmem:[%s239] sm:$0xff] %v378
        %s380 = scalar_lea.vmem %s248, 8
        %v381 = vld [vmem:[%s380] sm:$0x3]
        %s382 = scalar_lea.vmem %s0, 16
        %v383 = vld [vmem:[%s382] sm:$0xf]
        %v384 = vld [vmem:[%s239] sm:$0xff]
        %v386 = vsel %vm258, %v383, 0
        %v389 = vsel %vm262, %v381, 0
        %391 = vmatpush.bf16.msra.mxu0 0
        %392 = vmatpush.bf16.msra.mxu0 0
        %393 = vmatpush.bf16.msra.mxu0 0
        %394 = vmatpush.bf16.msra.mxu0 0
        %395 = vmatpush.bf16.msra.mxu0 0
        %396 = vmatpush.bf16.msra.mxu0 0
        %397 = vmatpush.bf16.msra.mxu0 0
        %398 = vmatpush.bf16.msra.mxu0 %v389
        %399 = vmatmul.bf16.gmra.mxu0 %v386
        %v400 = vpop.f32.mrf.mxu0
        %v401 = vadd.f32 0.0, %v400
        %v402 = vpop.f32.mrf.mxu0
        %403 = vdwg.mxu0
        %v404 = vadd.f32 %v384, %v401
        %405 = vst [vmem:[%s239] sm:$0xff] %v404
        %s406 = scalar_lea.vmem %s248, 12
        %v407 = vld [vmem:[%s406] sm:$0x3]
        %s408 = scalar_lea.vmem %s0, 20
        %v409 = vld [vmem:[%s408] sm:$0xf]
        %v410 = vld [vmem:[%s239] sm:$0xff]
        %v412 = vsel %vm258, %v409, 0
        %v415 = vsel %vm262, %v407, 0
        %417 = vmatpush.bf16.msra.mxu0 0
        %418 = vmatpush.bf16.msra.mxu0 0
        %419 = vmatpush.bf16.msra.mxu0 0
        %420 = vmatpush.bf16.msra.mxu0 0
        %421 = vmatpush.bf16.msra.mxu0 0
        %422 = vmatpush.bf16.msra.mxu0 0
        %423 = vmatpush.bf16.msra.mxu0 0
        %424 = vmatpush.bf16.msra.mxu0 %v415
        %425 = vmatmul.bf16.gmra.mxu0 %v412
        %v426 = vpop.f32.mrf.mxu0
        %v427 = vadd.f32 0.0, %v426
        %v428 = vpop.f32.mrf.mxu0
        %429 = vdwg.mxu0
        %v430 = vadd.f32 %v410, %v427
        %431 = vst [vmem:[%s239] sm:$0xff] %v430
        %v432 = vld [vmem:[%s380] sm:$0xf]
        %s433 = scalar_lea.vmem %s0, 24
        %v434 = vld [vmem:[%s433] sm:$0xf]
        %v435 = vld [vmem:[%s239] sm:$0xff]
        %437 = vst [vmem:[#allocation1] ss:$4 sm:$0xff] %v432
        %v438 = vld.sshfl [vmem:[#allocation1] sm:$0xff pattern:$0x73625140]
        %v440 = vld.sshfl [vmem:[#allocation1 + $0x8] sm:$0xff pattern:$0x73625140]
        %442 = vrot.lane.b32.xlu0 %v438, 127
        %v443 = vpop.permute.xlu0 %442
        %444 = vrot.lane.b32.xlu0 %v440, 127
        %v445 = vpop.permute.xlu0 %444
        %v446 = vsel %vm321, %v443, %v445
        %v448 = vsel %vm258, %v434, 0
        %v451 = vsel %vm262, %v446, 0
        %453 = vmatpush.bf16.msra.mxu0 0
        %454 = vmatpush.bf16.msra.mxu0 0
        %455 = vmatpush.bf16.msra.mxu0 0
        %456 = vmatpush.bf16.msra.mxu0 0
        %457 = vmatpush.bf16.msra.mxu0 0
        %458 = vmatpush.bf16.msra.mxu0 0
        %459 = vmatpush.bf16.msra.mxu0 0
        %460 = vmatpush.bf16.msra.mxu0 %v451
        %461 = vmatmul.bf16.gmra.mxu0 %v448
        %v462 = vpop.f32.mrf.mxu0
        %v463 = vadd.f32 0.0, %v462
        %v464 = vpop.f32.mrf.mxu0
        %465 = vdwg.mxu0
        %v466 = vadd.f32 %v435, %v463
        %467 = vst [vmem:[%s239] sm:$0xff] %v466
        %v468 = vld [vmem:[%s406] sm:$0xf]
        %s469 = scalar_lea.vmem %s0, 28
        %v470 = vld [vmem:[%s469] sm:$0xf]
        %v471 = vld [vmem:[%s239] sm:$0xff]
        %473 = vst [vmem:[#allocation1] ss:$4 sm:$0xff] %v468
        %v474 = vld.sshfl [vmem:[#allocation1] sm:$0xff pattern:$0x73625140]
        %v476 = vld.sshfl [vmem:[#allocation1 + $0x8] sm:$0xff pattern:$0x73625140]
        %478 = vrot.lane.b32.xlu0 %v474, 127
        %v479 = vpop.permute.xlu0 %478
        %480 = vrot.lane.b32.xlu0 %v476, 127
        %v481 = vpop.permute.xlu0 %480
        %v482 = vsel %vm321, %v479, %v481
        %v484 = vsel %vm258, %v470, 0
        %v487 = vsel %vm262, %v482, 0
        %489 = vmatpush.bf16.msra.mxu0 0
        %490 = vmatpush.bf16.msra.mxu0 0
        %491 = vmatpush.bf16.msra.mxu0 0
        %492 = vmatpush.bf16.msra.mxu0 0
        %493 = vmatpush.bf16.msra.mxu0 0
        %494 = vmatpush.bf16.msra.mxu0 0
        %495 = vmatpush.bf16.msra.mxu0 0
        %496 = vmatpush.bf16.msra.mxu0 %v487
        %497 = vmatmul.bf16.gmra.mxu0 %v484
        %v498 = vpop.f32.mrf.mxu0
        %v499 = vadd.f32 0.0, %v498
        %v500 = vpop.f32.mrf.mxu0
        %501 = vdwg.mxu0
        %v502 = vadd.f32 %v471, %v499
        %503 = vst [vmem:[%s239] sm:$0xff] %v502
        %v504 = vld [vmem:[%s248] sm:$0xf]
        %s505 = scalar_lea.vmem %s0, 32
        %v506 = vld [vmem:[%s505] sm:$0xf]
        %v507 = vld [vmem:[%s239] sm:$0xff]
        %509 = vst [vmem:[#allocation1] ss:$4 sm:$0xff] %v504
        %v510 = vld.sshfl [vmem:[#allocation1] sm:$0xff pattern:$0x73625140]
        %v512 = vld.sshfl [vmem:[#allocation1 + $0x8] sm:$0xff pattern:$0x73625140]
        %514 = vrot.lane.b32.xlu0 %v510, 120
        %v515 = vpop.permute.xlu0 %514
        %516 = vrot.lane.b32.xlu0 %v512, 120
        %v517 = vpop.permute.xlu0 %516
        %vm518 = vcmask 982016
        %v519 = vsel %vm518, %v515, %v517
        %v521 = vsel %vm258, %v506, 0
        %v524 = vsel %vm262, %v519, 0
        %526 = vmatpush.bf16.msra.mxu0 0
        %527 = vmatpush.bf16.msra.mxu0 0
        %528 = vmatpush.bf16.msra.mxu0 0
        %529 = vmatpush.bf16.msra.mxu0 0
        %530 = vmatpush.bf16.msra.mxu0 0
        %531 = vmatpush.bf16.msra.mxu0 0
        %532 = vmatpush.bf16.msra.mxu0 0
        %533 = vmatpush.bf16.msra.mxu0 %v524
        %534 = vmatmul.bf16.gmra.mxu0 %v521
        %v535 = vpop.f32.mrf.mxu0
        %v536 = vadd.f32 0.0, %v535
        %v537 = vpop.f32.mrf.mxu0
        %538 = vdwg.mxu0
        %v539 = vadd.f32 %v507, %v536
        %540 = vst [vmem:[%s239] sm:$0xff] %v539
        %v541 = vld [vmem:[%s281] sm:$0xf]
        %s542 = scalar_lea.vmem %s0, 36
        %v543 = vld [vmem:[%s542] sm:$0xf]
        %v544 = vld [vmem:[%s239] sm:$0xff]
        %546 = vst [vmem:[#allocation1] ss:$4 sm:$0xff] %v541
        %v547 = vld.sshfl [vmem:[#allocation1] sm:$0xff pattern:$0x73625140]
        %v549 = vld.sshfl [vmem:[#allocation1 + $0x8] sm:$0xff pattern:$0x73625140]
        %551 = vrot.lane.b32.xlu0 %v547, 120
        %v552 = vpop.permute.xlu0 %551
        %553 = vrot.lane.b32.xlu0 %v549, 120
        %v554 = vpop.permute.xlu0 %553
        %v555 = vsel %vm518, %v552, %v554
        %v557 = vsel %vm258, %v543, 0
        %v560 = vsel %vm262, %v555, 0
        %562 = vmatpush.bf16.msra.mxu0 0
        %563 = vmatpush.bf16.msra.mxu0 0
        %564 = vmatpush.bf16.msra.mxu0 0
        %565 = vmatpush.bf16.msra.mxu0 0
        %566 = vmatpush.bf16.msra.mxu0 0
        %567 = vmatpush.bf16.msra.mxu0 0
        %568 = vmatpush.bf16.msra.mxu0 0
        %569 = vmatpush.bf16.msra.mxu0 %v560
        %570 = vmatmul.bf16.gmra.mxu0 %v557
        %v571 = vpop.f32.mrf.mxu0
        %v572 = vadd.f32 0.0, %v571
        %v573 = vpop.f32.mrf.mxu0
        %574 = vdwg.mxu0
        %v575 = vadd.f32 %v544, %v572
        %576 = vst [vmem:[%s239] sm:$0xff] %v575
        %v577 = vld [vmem:[%s248] sm:$0xf]
        %s578 = scalar_lea.vmem %s0, 40
        %v579 = vld [vmem:[%s578] sm:$0xf]
        %v580 = vld [vmem:[%s239] sm:$0xff]
        %582 = vst [vmem:[#allocation1] ss:$4 sm:$0xff] %v577
        %v583 = vld.sshfl [vmem:[#allocation1] sm:$0xff pattern:$0x73625140]
        %v585 = vld.sshfl [vmem:[#allocation1 + $0x8] sm:$0xff pattern:$0x73625140]
        %587 = vrot.lane.b32.xlu0 %v583, 119
        %v588 = vpop.permute.xlu0 %587
        %589 = vrot.lane.b32.xlu0 %v585, 119
        %v590 = vpop.permute.xlu0 %589
        %vm591 = vcmask 973824
        %v592 = vsel %vm591, %v588, %v590
        %v594 = vsel %vm258, %v579, 0
        %v597 = vsel %vm262, %v592, 0
        %599 = vmatpush.bf16.msra.mxu0 0
        %600 = vmatpush.bf16.msra.mxu0 0
        %601 = vmatpush.bf16.msra.mxu0 0
        %602 = vmatpush.bf16.msra.mxu0 0
        %603 = vmatpush.bf16.msra.mxu0 0
        %604 = vmatpush.bf16.msra.mxu0 0
        %605 = vmatpush.bf16.msra.mxu0 0
        %606 = vmatpush.bf16.msra.mxu0 %v597
        %607 = vmatmul.bf16.gmra.mxu0 %v594
        %v608 = vpop.f32.mrf.mxu0
        %v609 = vadd.f32 0.0, %v608
        %v610 = vpop.f32.mrf.mxu0
        %611 = vdwg.mxu0
        %v612 = vadd.f32 %v580, %v609
        %613 = vst [vmem:[%s239] sm:$0xff] %v612
        %v614 = vld [vmem:[%s281] sm:$0xf]
        %s615 = scalar_lea.vmem %s0, 44
        %v616 = vld [vmem:[%s615] sm:$0xf]
        %v617 = vld [vmem:[%s239] sm:$0xff]
        %619 = vst [vmem:[#allocation1] ss:$4 sm:$0xff] %v614
        %v620 = vld.sshfl [vmem:[#allocation1] sm:$0xff pattern:$0x73625140]
        %v622 = vld.sshfl [vmem:[#allocation1 + $0x8] sm:$0xff pattern:$0x73625140]
        %624 = vrot.lane.b32.xlu0 %v620, 119
        %v625 = vpop.permute.xlu0 %624
        %626 = vrot.lane.b32.xlu0 %v622, 119
        %v627 = vpop.permute.xlu0 %626
        %v628 = vsel %vm591, %v625, %v627
        %v630 = vsel %vm258, %v616, 0
        %v633 = vsel %vm262, %v628, 0
        %635 = vmatpush.bf16.msra.mxu0 0
        %636 = vmatpush.bf16.msra.mxu0 0
        %637 = vmatpush.bf16.msra.mxu0 0
        %638 = vmatpush.bf16.msra.mxu0 0
        %639 = vmatpush.bf16.msra.mxu0 0
        %640 = vmatpush.bf16.msra.mxu0 0
        %641 = vmatpush.bf16.msra.mxu0 0
        %642 = vmatpush.bf16.msra.mxu0 %v633
        %643 = vmatmul.bf16.gmra.mxu0 %v630
        %v644 = vpop.f32.mrf.mxu0
        %v645 = vadd.f32 0.0, %v644
        %v646 = vpop.f32.mrf.mxu0
        %647 = vdwg.mxu0
        %v648 = vadd.f32 %v617, %v645
        %649 = vst [vmem:[%s239] sm:$0xff] %v648
        %v650 = vld [vmem:[%s380] sm:$0xf]
        %s651 = scalar_lea.vmem %s0, 48
        %v652 = vld [vmem:[%s651] sm:$0xf]
        %v653 = vld [vmem:[%s239] sm:$0xff]
        %655 = vst [vmem:[#allocation1] ss:$4 sm:$0xff] %v650
        %v656 = vld.sshfl [vmem:[#allocation1] sm:$0xff pattern:$0x73625140]
        %v658 = vld.sshfl [vmem:[#allocation1 + $0x8] sm:$0xff pattern:$0x73625140]
        %660 = vrot.lane.b32.xlu0 %v656, 120
        %v661 = vpop.permute.xlu0 %660
        %662 = vrot.lane.b32.xlu0 %v658, 120
        %v663 = vpop.permute.xlu0 %662
        %v664 = vsel %vm518, %v661, %v663
        %v666 = vsel %vm258, %v652, 0
        %v669 = vsel %vm262, %v664, 0
        %671 = vmatpush.bf16.msra.mxu0 0
        %672 = vmatpush.bf16.msra.mxu0 0
        %673 = vmatpush.bf16.msra.mxu0 0
        %674 = vmatpush.bf16.msra.mxu0 0
        %675 = vmatpush.bf16.msra.mxu0 0
        %676 = vmatpush.bf16.msra.mxu0 0
        %677 = vmatpush.bf16.msra.mxu0 0
        %678 = vmatpush.bf16.msra.mxu0 %v669
        %679 = vmatmul.bf16.gmra.mxu0 %v666
        %v680 = vpop.f32.mrf.mxu0
        %v681 = vadd.f32 0.0, %v680
        %v682 = vpop.f32.mrf.mxu0
        %683 = vdwg.mxu0
        %v684 = vadd.f32 %v653, %v681
        %685 = vst [vmem:[%s239] sm:$0xff] %v684
        %v686 = vld [vmem:[%s406] sm:$0xf]
        %s687 = scalar_lea.vmem %s0, 52
        %v688 = vld [vmem:[%s687] sm:$0xf]
        %v689 = vld [vmem:[%s239] sm:$0xff]
        %691 = vst [vmem:[#allocation1] ss:$4 sm:$0xff] %v686
        %v692 = vld.sshfl [vmem:[#allocation1] sm:$0xff pattern:$0x73625140]
        %v694 = vld.sshfl [vmem:[#allocation1 + $0x8] sm:$0xff pattern:$0x73625140]
        %696 = vrot.lane.b32.xlu0 %v692, 120
        %v697 = vpop.permute.xlu0 %696
        %698 = vrot.lane.b32.xlu0 %v694, 120
        %v699 = vpop.permute.xlu0 %698
        %v700 = vsel %vm518, %v697, %v699
        %v702 = vsel %vm258, %v688, 0
        %v705 = vsel %vm262, %v700, 0
        %707 = vmatpush.bf16.msra.mxu0 0
        %708 = vmatpush.bf16.msra.mxu0 0
        %709 = vmatpush.bf16.msra.mxu0 0
        %710 = vmatpush.bf16.msra.mxu0 0
        %711 = vmatpush.bf16.msra.mxu0 0
        %712 = vmatpush.bf16.msra.mxu0 0
        %713 = vmatpush.bf16.msra.mxu0 0
        %714 = vmatpush.bf16.msra.mxu0 %v705
        %715 = vmatmul.bf16.gmra.mxu0 %v702
        %v716 = vpop.f32.mrf.mxu0
        %v717 = vadd.f32 0.0, %v716
        %v718 = vpop.f32.mrf.mxu0
        %719 = vdwg.mxu0
        %v720 = vadd.f32 %v689, %v717
        %721 = vst [vmem:[%s239] sm:$0xff] %v720
        %v722 = vld [vmem:[%s380] sm:$0xf]
        %s723 = scalar_lea.vmem %s0, 56
        %v724 = vld [vmem:[%s723] sm:$0xf]
        %v725 = vld [vmem:[%s239] sm:$0xff]
        %727 = vst [vmem:[#allocation1] ss:$4 sm:$0xff] %v722
        %v728 = vld.sshfl [vmem:[#allocation1] sm:$0xff pattern:$0x73625140]
        %v730 = vld.sshfl [vmem:[#allocation1 + $0x8] sm:$0xff pattern:$0x73625140]
        %732 = vrot.lane.b32.xlu0 %v728, 119
        %v733 = vpop.permute.xlu0 %732
        %734 = vrot.lane.b32.xlu0 %v730, 119
        %v735 = vpop.permute.xlu0 %734
        %v736 = vsel %vm591, %v733, %v735
        %v738 = vsel %vm258, %v724, 0
        %v741 = vsel %vm262, %v736, 0
        %743 = vmatpush.bf16.msra.mxu0 0
        %744 = vmatpush.bf16.msra.mxu0 0
        %745 = vmatpush.bf16.msra.mxu0 0
        %746 = vmatpush.bf16.msra.mxu0 0
        %747 = vmatpush.bf16.msra.mxu0 0
        %748 = vmatpush.bf16.msra.mxu0 0
        %749 = vmatpush.bf16.msra.mxu0 0
        %750 = vmatpush.bf16.msra.mxu0 %v741
        %751 = vmatmul.bf16.gmra.mxu0 %v738
        %v752 = vpop.f32.mrf.mxu0
        %v753 = vadd.f32 0.0, %v752
        %v754 = vpop.f32.mrf.mxu0
        %755 = vdwg.mxu0
        %v756 = vadd.f32 %v725, %v753
        %757 = vst [vmem:[%s239] sm:$0xff] %v756
        %v758 = vld [vmem:[%s406] sm:$0xf]
        %s759 = scalar_lea.vmem %s0, 60
        %v760 = vld [vmem:[%s759] sm:$0xf]
        %v761 = vld [vmem:[%s239] sm:$0xff]
        %763 = vst [vmem:[#allocation1] ss:$4 sm:$0xff] %v758
        %v764 = vld.sshfl [vmem:[#allocation1] sm:$0xff pattern:$0x73625140]
        %v766 = vld.sshfl [vmem:[#allocation1 + $0x8] sm:$0xff pattern:$0x73625140]
        %768 = vrot.lane.b32.xlu0 %v764, 119
        %v769 = vpop.permute.xlu0 %768
        %770 = vrot.lane.b32.xlu0 %v766, 119
        %v771 = vpop.permute.xlu0 %770
        %v772 = vsel %vm591, %v769, %v771
        %v774 = vsel %vm258, %v760, 0
        %v777 = vsel %vm262, %v772, 0
        %779 = vmatpush.bf16.msra.mxu0 0
        %780 = vmatpush.bf16.msra.mxu0 0
        %781 = vmatpush.bf16.msra.mxu0 0
        %782 = vmatpush.bf16.msra.mxu0 0
        %783 = vmatpush.bf16.msra.mxu0 0
        %784 = vmatpush.bf16.msra.mxu0 0
        %785 = vmatpush.bf16.msra.mxu0 0
        %786 = vmatpush.bf16.msra.mxu0 %v777
        %787 = vmatmul.bf16.gmra.mxu0 %v774
        %v788 = vpop.f32.mrf.mxu0
        %v789 = vadd.f32 0.0, %v788
        %v790 = vpop.f32.mrf.mxu0
        %791 = vdwg.mxu0
        %v792 = vadd.f32 %v761, %v789
        %793 = vst [vmem:[%s239] sm:$0xff] %v792
        // Predicated region
        $region45: #{tpu_custom_call.1} parent=39 // pred_check
          %p794 = pneg %p250
        $region46: #{tpu_custom_call.1} parent=39 // pred_check_branch
          %796 = sbr.rel (%p794) target = $region48
        $region47: #{tpu_custom_call.1} parent=39 // pred_region
          %v797 = vld [vmem:[%s239] sm:$0xff]
          %v798 = vld [vmem:[%s2] sm:$0x1]
          %v800 = vperm.slane %v798, 0
          %v802 = vmul.f32 %v797, %v800
          %803 = vadd.xlane.f32.xlu0 %v802
          %v804 = vpop.xlane.xlu0 %803
          %v805 = vmul.f32 %v804, 0.020408163
          %v806 = vmul.f32 %v802, %v797
          %807 = vadd.xlane.f32.xlu0 %v806
          %v808 = vpop.xlane.xlu0 %807
          %v809 = vmul.f32 %v808, 0.020408163
          %v810 = vmul.f32 %v805, %v805
          %v811 = vsub.f32 %v809, %v810
          %v812 = vld [vmem:[%s3] sm:$0xff]
          %v813 = vadd.f32 %v811, 1e-05
          %v814 = vrsqrt.pop %v813
          %v815 = vmul.f32 %v814, %v813
          %v816 = vmul.f32 %v815, %v814
          %v817 = vmul.f32 0.5, %v816
          %v818 = vsub.f32 1.5, %v817
          %v819 = vmul.f32 %v814, %v818
          %vm820 = vweird.f32 %v813
          %vm821 = vweird.f32 %v814
          %vm822 = vmor %vm820, %vm821
          %v823 = vsel %vm822, %v814, %v819
          %v824 = vmul.f32 %v812, %v823
          %v825 = vld [vmem:[%s4] sm:$0xff]
          %v826 = vmul.f32 %v805, %v824
          %v827 = vsub.f32 %v825, %v826
          %829 = vset.pattern.permute.xlu0 0
          %830 = vperm.xlu0 %829, %v824
          %v831 = vpop.permute.xlu0 %830
          %v833 = vmul.f32 %v797, %v831
          %835 = vset.pattern.permute.xlu0 0
          %836 = vperm.xlu0 %835, %v827
          %v837 = vpop.permute.xlu0 %836
          %v839 = vadd.f32 %v833, %v837
          %v840 = vmul.f32 %v839, 0.2
          %v841 = vmax.f32 %v839, %v840
          %842 = vst [vmem:[%s239] sm:$0xff] %v841
        $region48: #{tpu_custom_call.1} parent=39 // pred_fallthru
          _
        %s843 = sand.u32 %s151, 1
        %s844 = scalar_lea.sflag [#allocation3], %s843
        %s845 = sand.u32 %s151, 1
        %s846 = smul.addr %s845, 8
        %s847 = scalar_lea.vmem [#allocation2], %s846
        // Predicated region
        $region49: #{tpu_custom_call.1} parent=39 // pred_check
          %p848 = pneg %p161
        $region50: #{tpu_custom_call.1} parent=39 // pred_check_branch
          %850 = sbr.rel (%p848) target = $region52
        $region51: #{tpu_custom_call.1} parent=39 // pred_region
          %852 = vsyncadd %s844, 0
          %s853 = smul.addr %s23, 8
          %s854 = scalar_lea.hbm %s5, %s853
          %s856 = sshll.u32 %s847, 4
          %s857 = int_to_ptr.vmem [resolvable:$true] %s856
          %s858 = sshll.u32 %s854, 4
          %s859 = int_to_ptr.hbm [resolvable:$true] %s858
          %861 = dma.vmem_to_hbm [thread:$0]  %s857, 128, %s859, %s844
        $region52: #{tpu_custom_call.1} parent=39 // pred_fallthru
          _
      $region40: #{tpu_custom_call.1} parent=5 // pred_fallthru
        _
      %p862 = scmp.le.s32.totalorder 2, %s14
      // Predicated region
      $region53: #{tpu_custom_call.1} parent=5 // pred_check
        %p863 = pneg %p862
      $region54: #{tpu_custom_call.1} parent=5 // pred_check_branch
        %865 = sbr.rel (%p863) target = $region56
      $region55: #{tpu_custom_call.1} parent=5 // pred_region
        %s866 = ssub.s32 %s14, 2
        // Predicated region
        $region57: #{tpu_custom_call.1} parent=55 // pred_check
          %p867 = pneg %p167
        $region58: #{tpu_custom_call.1} parent=55 // pred_check_branch
          %869 = sbr.rel (%p867) target = $region60
        $region59: #{tpu_custom_call.1} parent=55 // pred_region
          %s870 = sand.u32 %s152, 1
          %s871 = scalar_lea.sflag [#allocation3], %s870
          %s872 = sand.u32 %s152, 1
          %s873 = smul.addr %s872, 8
          %s874 = scalar_lea.vmem [#allocation2], %s873
          %876 = dma.done %s871, 128
        $region60: #{tpu_custom_call.1} parent=55 // pred_fallthru
          _
      $region56: #{tpu_custom_call.1} parent=5 // pred_fallthru
        _
    $region6: #{tpu_custom_call.1} parent=1 // loop_footer
      %s18 = sadd.s32 1, %s14
    $region7: #{tpu_custom_call.1} parent=1 // loop_footer_branch
      %13 = sbr.rel target = $region3
    $region8: #{tpu_custom_call.1} parent=1 // loop_exit
      _
    %877 = vsyncpa [#allocation3], 1
    %s878 = scalar_lea.sflag [#allocation3], 1
    %879 = vsyncpa %s878, 1

</llo_original>
